<compile_context>
chip_gen: v6e
topology: v6e:2x2x1
jax: 0.10.0
libtpu: 0.0.40
codegen_flags: <defaults>
</compile_context>

<pallas_src>
import jax
import jax.numpy as jnp
import numpy as np
from jax import lax
from jax.experimental import pallas as pl
from jax.experimental.pallas import tpu as pltpu


CONV_KH = 7
CONV_KW = 7
CONV_STRIDE = 2
CONV_PADDING = 3
TAPS_PAD = 64      # 7*7 = 49 kernel taps zero-padded to 64 -> K = C*64 (=256 for C=4)
COUT_PAD = 128     # conv output channels 64 zero-padded to 128 -> lane-dense stores
BN_EPS = 1e-5


# ----------------------------------------------------------------------------
# Kernel 1: conv stem as im2col matmul (bf16 in, f32 accumulate), fused +shift + ReLU.
# (BatchNorm scale is folded into the weight columns at parameter-prep time.)
# ----------------------------------------------------------------------------
def conv_bn_relu_kernel(p_ref, w_ref, shift_ref, o_ref):
    acc = jnp.dot(p_ref[...], w_ref[...], preferred_element_type=jnp.float32)
    o_ref[...] = jnp.maximum(acc + shift_ref[...], 0.0)


def _round_up(x, m):
    return ((x + m - 1) // m) * m


def _choose_tm(m):
    # Big tiles amortize per-grid-step overhead and fill the MXU rows, while keeping
    # >=2 grid blocks (megacore sharding) and staying far below v7x's 64 MiB VMEM.
    if m >= 1024:
        return 512
    if m >= 256:
        return 128
    return _round_up(m, 8)   # tiny problem: single small block


def conv_bn_relu(patches, w_mat, shift):
    m, k = patches.shape
    _, n = w_mat.shape
    tm = _choose_tm(m)
    m_pad = _round_up(m, tm)
    if m_pad != m:
        patches = jnp.pad(patches, ((0, m_pad - m), (0, 0)))
    grid = (m_pad // tm,)
    return pl.pallas_call(
        conv_bn_relu_kernel,
        out_shape=jax.ShapeDtypeStruct((m_pad, n), jnp.float32),
        grid=grid,
        in_specs=[
            pl.BlockSpec((tm, k), lambda i: (i, 0)),
            pl.BlockSpec((k, n), lambda i: (0, 0)),
            pl.BlockSpec((1, n), lambda i: (0, 0)),
        ],
        out_specs=pl.BlockSpec((tm, n), lambda i: (i, 0)),
        compiler_params=pltpu.CompilerParams(
            dimension_semantics=("parallel",),
            vmem_limit_bytes=32 * 1024 * 1024),
    )(patches, w_mat, shift)


# ----------------------------------------------------------------------------
# Kernel 2: MaxPool(3,s2,p1) + global avg pool + 2-step tanh RNN + Linear (+Sigmoid),
# fused for the stacked [source, target] batch. Channels stay on the lane axis.
# ----------------------------------------------------------------------------
def make_head_kernel(batch, use_sigmoid):
    def head_kernel(y_ref, wih_ref, whh_ref, b_ref, wout_ref, bout_ref, o_ref):
        y = y_ref[...]                                   # (2B, OH, OW, Cp) f32, post-ReLU
        _, oh, ow, cp = y.shape
        ph = (oh + 2 - 3) // 2 + 1
        pw = (ow + 2 - 3) // 2 + 1
        # MaxPool(3, stride 2, pad 1) fused with the global average pool.
        # Clipped windows == -inf-padded windows for max pooling.
        acc = jnp.zeros((y.shape[0], cp), jnp.float32)
        for p in range(ph):
            r0, r1 = max(0, 2 * p - 1), min(oh, 2 * p + 2)
            row = jnp.max(y[:, r0:r1], axis=1)           # (2B, OW, Cp)
            for q in range(pw):
                c0, c1 = max(0, 2 * q - 1), min(ow, 2 * q + 2)
                acc = acc + jnp.max(row[:, c0:c1], axis=1)
        feat = acc * (1.0 / (ph * pw))                   # (2B, Cp) global average pool
        xs, xt = feat[:batch], feat[batch:]              # sequence = [source, target]
        b = b_ref[...]
        # h0 = 0  ->  h1 = tanh(xs W_ih + b);  h2 = tanh(xt W_ih + h1 W_hh + b)
        h1 = jnp.tanh(jnp.dot(xs, wih_ref[...], preferred_element_type=jnp.float32) + b)
        h2 = jnp.tanh(jnp.dot(xt, wih_ref[...], preferred_element_type=jnp.float32)
                      + jnp.dot(h1, whh_ref[...], preferred_element_type=jnp.float32) + b)
        logits = jnp.dot(h2, wout_ref[...], preferred_element_type=jnp.float32) + bout_ref[...]
        o_ref[...] = jax.nn.sigmoid(logits) if use_sigmoid else logits
    return head_kernel


def rel_head(y, prep, *, batch, use_sigmoid):
    num_rels = prep["w_out"].shape[1]
    args = (y, prep["w_ih"], prep["w_hh"], prep["b_rnn"], prep["w_out"], prep["b_out"])
    return pl.pallas_call(
        make_head_kernel(batch, use_sigmoid),
        out_shape=jax.ShapeDtypeStruct((batch, num_rels), jnp.float32),
        in_specs=[pl.BlockSpec(memory_space=pltpu.MemorySpace.VMEM)] * len(args),
        out_specs=pl.BlockSpec(memory_space=pltpu.MemorySpace.VMEM),
    )(*args)


# ----------------------------------------------------------------------------
# Glue: NHWC im2col with K padded to C*TAPS_PAD (plain JAX; tiny at these shapes).
# ----------------------------------------------------------------------------
def im2col_nhwc(x, kh, kw, stride, pad):
    b, h, w, c = x.shape
    oh = (h + 2 * pad - kh) // stride + 1
    ow = (w + 2 * pad - kw) // stride + 1
    xp = jnp.pad(x, ((0, 0), (pad, pad), (pad, pad), (0, 0)))
    taps = []
    for i in range(kh):
        for j in range(kw):
            taps.append(xp[:, i:i + stride * oh:stride, j:j + stride * ow:stride, :])
    pt = jnp.stack(taps, axis=-1)                                # (B, OH, OW, C, KH*KW)
    pt = jnp.pad(pt, ((0, 0), (0, 0), (0, 0), (0, 0), (0, TAPS_PAD - kh * kw)))
    return pt.reshape(b * oh * ow, c * TAPS_PAD), oh, ow


def relnet_forward(source, target, prep, *, use_sigmoid=True):
    batch = source.shape[0]
    x = jnp.concatenate([source, target], axis=0)                # (2B, C, H, W)
    x = jnp.transpose(x, (0, 2, 3, 1)).astype(jnp.bfloat16)      # NHWC, bf16 into the MXU
    patches, oh, ow = im2col_nhwc(x, CONV_KH, CONV_KW, CONV_STRIDE, CONV_PADDING)
    y = conv_bn_relu(patches, prep["w_mat"], prep["shift"])      # (M_pad, 128) f32
    m = x.shape[0] * oh * ow
    if y.shape[0] != m:
        y = y[:m]
    y = y.reshape(x.shape[0], oh, ow, COUT_PAD)                  # NHWC conv features
    return rel_head(y, prep, batch=batch, use_sigmoid=use_sigmoid)


# ----------------------------------------------------------------------------
# Parameters: raw (PyTorch-like) init + one-time inference-prep transform.
# ----------------------------------------------------------------------------
def init_params(key, in_ch=4, conv_out=64, hidden=128, num_rels=8):
    ks = jax.random.split(key, 11)
    conv_w = 0.05 * jax.random.normal(ks[0], (conv_out, in_ch, 7, 7), jnp.float32)
    gamma = 1.0 + 0.1 * jax.random.normal(ks[1], (conv_out,), jnp.float32)
    beta = 0.1 * jax.random.normal(ks[2], (conv_out,), jnp.float32)
    mean = 0.1 * jax.random.normal(ks[3], (conv_out,), jnp.float32)
    var = 1.0 + 0.1 * jax.random.uniform(ks[4], (conv_out,), jnp.float32)
    f = conv_out  # simplified num_features (would be 512 with the full resnet34 body)
    w_ih = jax.random.normal(ks[5], (f, hidden), jnp.float32) / jnp.sqrt(f)
    w_hh = jax.random.normal(ks[6], (hidden, hidden), jnp.float32) / jnp.sqrt(hidden)
    b_ih = 0.1 * jax.random.normal(ks[7], (1, hidden), jnp.float32)
    b_hh = 0.1 * jax.random.normal(ks[8], (1, hidden), jnp.float32)
    w_out = jax.random.normal(ks[9], (hidden, num_rels), jnp.float32) / jnp.sqrt(hidden)
    b_out = 0.1 * jax.random.normal(ks[10], (1, num_rels), jnp.float32)
    return dict(conv_w=conv_w, gamma=gamma, beta=beta, mean=mean, var=var,
                w_ih=w_ih, w_hh=w_hh, b_ih=b_ih, b_hh=b_hh, w_out=w_out, b_out=b_out)


def prepare_inference_params(raw):
    """One-time transform: fold BN scale into the conv weights, pad taps 49->64,
    pad output channels 64->128, combine the RNN biases, cast MXU weights to bf16."""
    scale = raw["gamma"] / jnp.sqrt(raw["var"] + BN_EPS)
    shift = raw["beta"] - raw["mean"] * scale
    o, c, kh, kw = raw["conv_w"].shape
    w = raw["conv_w"] * scale[:, None, None, None]               # BN scale folded in
    w = w.reshape(o, c, kh * kw)
    w = jnp.pad(w, ((0, COUT_PAD - o), (0, 0), (0, TAPS_PAD - kh * kw)))
    w_mat = w.reshape(COUT_PAD, c * TAPS_PAD).T.astype(jnp.bfloat16)   # (C*64, 128)
    shift_p = jnp.pad(shift, (0, COUT_PAD - o)).reshape(1, COUT_PAD)
    w_ih_p = jnp.pad(raw["w_ih"], ((0, COUT_PAD - o), (0, 0)))         # (128, hidden)
    return dict(w_mat=w_mat, shift=shift_p, w_ih=w_ih_p, w_hh=raw["w_hh"],
                b_rnn=raw["b_ih"] + raw["b_hh"], w_out=raw["w_out"], b_out=raw["b_out"])


# ----------------------------------------------------------------------------
# Pure-JAX reference with the same numeric choices (bf16 conv inputs, f32 accumulate).
# ----------------------------------------------------------------------------
def relnet_reference(source, target, raw, *, use_sigmoid=True):
    scale = raw["gamma"] / jnp.sqrt(raw["var"] + BN_EPS)
    shift = raw["beta"] - raw["mean"] * scale
    w_s = (raw["conv_w"] * scale[:, None, None, None]).astype(jnp.bfloat16)

    def feat(x):
        y = lax.conv_general_dilated(x.astype(jnp.bfloat16), w_s, (2, 2), ((3, 3), (3, 3)),
                                     dimension_numbers=("NCHW", "OIHW", "NCHW"),
                                     preferred_element_type=jnp.float32)
        y = jnp.maximum(y + shift.reshape(1, -1, 1, 1), 0.0)
        y = lax.reduce_window(y, -jnp.inf, lax.max,
                              (1, 1, 3, 3), (1, 1, 2, 2),
                              [(0, 0), (0, 0), (1, 1), (1, 1)])
        return y.reshape(y.shape[0], y.shape[1], -1).mean(-1)

    xs, xt = feat(source), feat(target)
    b = raw["b_ih"] + raw["b_hh"]
    h1 = jnp.tanh(xs @ raw["w_ih"] + b)
    h2 = jnp.tanh(xt @ raw["w_ih"] + h1 @ raw["w_hh"] + b)
    out = h2 @ raw["w_out"] + raw["b_out"]
    return jax.nn.sigmoid(out) if use_sigmoid else out


if __name__ == "__main__":
    key = jax.random.PRNGKey(0)
    kp, ksrc, ktgt = jax.random.split(key, 3)
    raw = init_params(kp, in_ch=4, conv_out=64, hidden=128, num_rels=8)
    prep = prepare_inference_params(raw)

    source = jax.random.normal(ksrc, (2, 4, 16, 16), jnp.float32)
    target = jax.random.normal(ktgt, (2, 4, 16, 16), jnp.float32)

    fwd = jax.jit(lambda s, t, p: relnet_forward(s, t, p, use_sigmoid=True))
    out = jax.block_until_ready(fwd(source, target, prep))

    ref = relnet_reference(source, target, raw, use_sigmoid=True)
    assert out.shape == (2, 8), out.shape
    np.testing.assert_allclose(np.asarray(out), np.asarray(ref), rtol=2e-3, atol=2e-3)
    print("KERNEL_OK")
</pallas_src>

<mosaic_0001>
module attributes {stable_mosaic.version = 11 : i64} {
  func.func @conv_bn_relu_kernel(%arg0: i32, %arg1: memref<128x256xbf16, #tpu.memory_space<vmem>>, %arg2: memref<256x128xbf16, #tpu.memory_space<vmem>>, %arg3: memref<1x128xf32, #tpu.memory_space<vmem>>, %arg4: memref<128x128xf32, #tpu.memory_space<vmem>>) attributes {dimension_semantics = [#tpu.dimension_semantics<parallel>], iteration_bounds = array<i64: 2>, scalar_prefetch = 0 : i64, scratch_operands = 0 : i64, tpu.core_type = #tpu.core_type<tc>, window_params = [{transform_indices = @transform_0, window_bounds = array<i64: 128, 256>}, {pipeline_mode = #tpu.pipeline_mode<synchronous>, transform_indices = @transform_1, window_bounds = array<i64: 256, 128>}, {pipeline_mode = #tpu.pipeline_mode<synchronous>, transform_indices = @transform_2, window_bounds = array<i64: 1, 128>}, {transform_indices = @transform_3, window_bounds = array<i64: 128, 128>}]} {
    %c0 = arith.constant 0 : index
    %c0_0 = arith.constant 0 : index
    %0 = vector.load %arg1[%c0, %c0_0] : memref<128x256xbf16, #tpu.memory_space<vmem>>, vector<128x256xbf16>
    %c0_1 = arith.constant 0 : index
    %c0_2 = arith.constant 0 : index
    %1 = vector.load %arg2[%c0_1, %c0_2] : memref<256x128xbf16, #tpu.memory_space<vmem>>, vector<256x128xbf16>
    %cst = arith.constant dense<0.000000e+00> : vector<128x128xf32>
    %2 = tpu.matmul %0, %1, %cst {dimension_numbers = #tpu.dot_dimension_numbers<[1], [0], [0], [1], [0, 0, 1, 1], [], []>} : vector<128x256xbf16>, vector<256x128xbf16>, vector<128x128xf32> -> vector<128x128xf32>
    %c0_3 = arith.constant 0 : index
    %c0_4 = arith.constant 0 : index
    %3 = vector.load %arg3[%c0_3, %c0_4] : memref<1x128xf32, #tpu.memory_space<vmem>>, vector<1x128xf32>
    %4 = vector.broadcast %3 : vector<1x128xf32> to vector<128x128xf32>
    %5 = arith.addf %2, %4 : vector<128x128xf32>
    %cst_5 = arith.constant 0.000000e+00 : f32
    %6 = vector.broadcast %cst_5 : f32 to vector<128x128xf32>
    %7 = arith.maximumf %5, %6 : vector<128x128xf32>
    %c0_6 = arith.constant 0 : index
    %c0_7 = arith.constant 0 : index
    %8 = vector.load %arg4[%c0_6, %c0_7] : memref<128x128xf32, #tpu.memory_space<vmem>>, vector<128x128xf32>
    tpu.vector_store %arg4[%c0_6, %c0_7], %7 {strides = array<i32>} : memref<128x128xf32, #tpu.memory_space<vmem>>, vector<128x128xf32>,
    return
  }
  func.func @transform_0(%arg0: i32) -> (i32, i32) {
    %c0_i32 = arith.constant 0 : i32
    %c0_i32_0 = arith.constant 0 : i32
    return %arg0, %c0_i32 : i32, i32
  }
  func.func @transform_1(%arg0: i32) -> (i32, i32) {
    %c0_i32 = arith.constant 0 : i32
    %c0_i32_0 = arith.constant 0 : i32
    %c0_i32_1 = arith.constant 0 : i32
    return %c0_i32, %c0_i32_0 : i32, i32
  }
  func.func @transform_2(%arg0: i32) -> (i32, i32) {
    %c0_i32 = arith.constant 0 : i32
    %c0_i32_0 = arith.constant 0 : i32
    %c0_i32_1 = arith.constant 0 : i32
    return %c0_i32, %c0_i32_0 : i32, i32
  }
  func.func @transform_3(%arg0: i32) -> (i32, i32) {
    %c0_i32 = arith.constant 0 : i32
    %c0_i32_0 = arith.constant 0 : i32
    return %arg0, %c0_i32 : i32, i32
  }
}

module attributes {stable_mosaic.version = 11 : i64} {
  func.func @head_kernel(%arg0: memref<4x8x8x128xf32, #tpu.memory_space<vmem>>, %arg1: memref<128x128xf32, #tpu.memory_space<vmem>>, %arg2: memref<128x128xf32, #tpu.memory_space<vmem>>, %arg3: memref<1x128xf32, #tpu.memory_space<vmem>>, %arg4: memref<128x8xf32, #tpu.memory_space<vmem>>, %arg5: memref<1x8xf32, #tpu.memory_space<vmem>>, %arg6: memref<2x8xf32, #tpu.memory_space<vmem>>) attributes {dimension_semantics = [], scalar_prefetch = 0 : i64, scratch_operands = 0 : i64, tpu.core_type = #tpu.core_type<tc>} {
    %c0 = arith.constant 0 : index
    %c0_0 = arith.constant 0 : index
    %c0_1 = arith.constant 0 : index
    %c0_2 = arith.constant 0 : index
    %0 = vector.load %arg0[%c0, %c0_0, %c0_1, %c0_2] : memref<4x8x8x128xf32, #tpu.memory_space<vmem>>, vector<4x8x8x128xf32>
    %cst = arith.constant 0.000000e+00 : f32
    %1 = vector.broadcast %cst : f32 to vector<4x128xf32>
    %2 = vector.extract_strided_slice %0 {offsets = [0, 0, 0, 0], sizes = [4, 2, 8, 128], strides = [1, 1, 1, 1]} : vector<4x8x8x128xf32> to vector<4x2x8x128xf32>
    %cst_3 = arith.constant dense<0xFF800000> : vector<4x8x128xf32>
    %3 = vector.multi_reduction <maximumf>, %2, %cst_3 [1] : vector<4x2x8x128xf32> to vector<4x8x128xf32>
    %4 = vector.extract_strided_slice %3 {offsets = [0, 0, 0], sizes = [4, 2, 128], strides = [1, 1, 1]} : vector<4x8x128xf32> to vector<4x2x128xf32>
    %cst_4 = arith.constant dense<0xFF800000> : vector<4x128xf32>
    %5 = vector.multi_reduction <maximumf>, %4, %cst_4 [1] : vector<4x2x128xf32> to vector<4x128xf32>
    %6 = arith.addf %1, %5 : vector<4x128xf32>
    %7 = vector.extract_strided_slice %3 {offsets = [0, 1, 0], sizes = [4, 3, 128], strides = [1, 1, 1]} : vector<4x8x128xf32> to vector<4x3x128xf32>
    %cst_5 = arith.constant dense<0xFF800000> : vector<4x128xf32>
    %8 = vector.multi_reduction <maximumf>, %7, %cst_5 [1] : vector<4x3x128xf32> to vector<4x128xf32>
    %9 = arith.addf %6, %8 : vector<4x128xf32>
    %10 = vector.extract_strided_slice %3 {offsets = [0, 3, 0], sizes = [4, 3, 128], strides = [1, 1, 1]} : vector<4x8x128xf32> to vector<4x3x128xf32>
    %cst_6 = arith.constant dense<0xFF800000> : vector<4x128xf32>
    %11 = vector.multi_reduction <maximumf>, %10, %cst_6 [1] : vector<4x3x128xf32> to vector<4x128xf32>
    %12 = arith.addf %9, %11 : vector<4x128xf32>
    %13 = vector.extract_strided_slice %3 {offsets = [0, 5, 0], sizes = [4, 3, 128], strides = [1, 1, 1]} : vector<4x8x128xf32> to vector<4x3x128xf32>
    %cst_7 = arith.constant dense<0xFF800000> : vector<4x128xf32>
    %14 = vector.multi_reduction <maximumf>, %13, %cst_7 [1] : vector<4x3x128xf32> to vector<4x128xf32>
    %15 = arith.addf %12, %14 : vector<4x128xf32>
    %16 = vector.extract_strided_slice %0 {offsets = [0, 1, 0, 0], sizes = [4, 3, 8, 128], strides = [1, 1, 1, 1]} : vector<4x8x8x128xf32> to vector<4x3x8x128xf32>
    %cst_8 = arith.constant dense<0xFF800000> : vector<4x8x128xf32>
    %17 = vector.multi_reduction <maximumf>, %16, %cst_8 [1] : vector<4x3x8x128xf32> to vector<4x8x128xf32>
    %18 = vector.extract_strided_slice %17 {offsets = [0, 0, 0], sizes = [4, 2, 128], strides = [1, 1, 1]} : vector<4x8x128xf32> to vector<4x2x128xf32>
    %cst_9 = arith.constant dense<0xFF800000> : vector<4x128xf32>
    %19 = vector.multi_reduction <maximumf>, %18, %cst_9 [1] : vector<4x2x128xf32> to vector<4x128xf32>
    %20 = arith.addf %15, %19 : vector<4x128xf32>
    %21 = vector.extract_strided_slice %17 {offsets = [0, 1, 0], sizes = [4, 3, 128], strides = [1, 1, 1]} : vector<4x8x128xf32> to vector<4x3x128xf32>
    %cst_10 = arith.constant dense<0xFF800000> : vector<4x128xf32>
    %22 = vector.multi_reduction <maximumf>, %21, %cst_10 [1] : vector<4x3x128xf32> to vector<4x128xf32>
    %23 = arith.addf %20, %22 : vector<4x128xf32>
    %24 = vector.extract_strided_slice %17 {offsets = [0, 3, 0], sizes = [4, 3, 128], strides = [1, 1, 1]} : vector<4x8x128xf32> to vector<4x3x128xf32>
    %cst_11 = arith.constant dense<0xFF800000> : vector<4x128xf32>
    %25 = vector.multi_reduction <maximumf>, %24, %cst_11 [1] : vector<4x3x128xf32> to vector<4x128xf32>
    %26 = arith.addf %23, %25 : vector<4x128xf32>
    %27 = vector.extract_strided_slice %17 {offsets = [0, 5, 0], sizes = [4, 3, 128], strides = [1, 1, 1]} : vector<4x8x128xf32> to vector<4x3x128xf32>
    %cst_12 = arith.constant dense<0xFF800000> : vector<4x128xf32>
    %28 = vector.multi_reduction <maximumf>, %27, %cst_12 [1] : vector<4x3x128xf32> to vector<4x128xf32>
    %29 = arith.addf %26, %28 : vector<4x128xf32>
    %30 = vector.extract_strided_slice %0 {offsets = [0, 3, 0, 0], sizes = [4, 3, 8, 128], strides = [1, 1, 1, 1]} : vector<4x8x8x128xf32> to vector<4x3x8x128xf32>
    %cst_13 = arith.constant dense<0xFF800000> : vector<4x8x128xf32>
    %31 = vector.multi_reduction <maximumf>, %30, %cst_13 [1] : vector<4x3x8x128xf32> to vector<4x8x128xf32>
    %32 = vector.extract_strided_slice %31 {offsets = [0, 0, 0], sizes = [4, 2, 128], strides = [1, 1, 1]} : vector<4x8x128xf32> to vector<4x2x128xf32>
    %cst_14 = arith.constant dense<0xFF800000> : vector<4x128xf32>
    %33 = vector.multi_reduction <maximumf>, %32, %cst_14 [1] : vector<4x2x128xf32> to vector<4x128xf32>
    %34 = arith.addf %29, %33 : vector<4x128xf32>
    %35 = vector.extract_strided_slice %31 {offsets = [0, 1, 0], sizes = [4, 3, 128], strides = [1, 1, 1]} : vector<4x8x128xf32> to vector<4x3x128xf32>
    %cst_15 = arith.constant dense<0xFF800000> : vector<4x128xf32>
    %36 = vector.multi_reduction <maximumf>, %35, %cst_15 [1] : vector<4x3x128xf32> to vector<4x128xf32>
    %37 = arith.addf %34, %36 : vector<4x128xf32>
    %38 = vector.extract_strided_slice %31 {offsets = [0, 3, 0], sizes = [4, 3, 128], strides = [1, 1, 1]} : vector<4x8x128xf32> to vector<4x3x128xf32>
    %cst_16 = arith.constant dense<0xFF800000> : vector<4x128xf32>
    %39 = vector.multi_reduction <maximumf>, %38, %cst_16 [1] : vector<4x3x128xf32> to vector<4x128xf32>
    %40 = arith.addf %37, %39 : vector<4x128xf32>
    %41 = vector.extract_strided_slice %31 {offsets = [0, 5, 0], sizes = [4, 3, 128], strides = [1, 1, 1]} : vector<4x8x128xf32> to vector<4x3x128xf32>
    %cst_17 = arith.constant dense<0xFF800000> : vector<4x128xf32>
    %42 = vector.multi_reduction <maximumf>, %41, %cst_17 [1] : vector<4x3x128xf32> to vector<4x128xf32>
    %43 = arith.addf %40, %42 : vector<4x128xf32>
    %44 = vector.extract_strided_slice %0 {offsets = [0, 5, 0, 0], sizes = [4, 3, 8, 128], strides = [1, 1, 1, 1]} : vector<4x8x8x128xf32> to vector<4x3x8x128xf32>
    %cst_18 = arith.constant dense<0xFF800000> : vector<4x8x128xf32>
    %45 = vector.multi_reduction <maximumf>, %44, %cst_18 [1] : vector<4x3x8x128xf32> to vector<4x8x128xf32>
    %46 = vector.extract_strided_slice %45 {offsets = [0, 0, 0], sizes = [4, 2, 128], strides = [1, 1, 1]} : vector<4x8x128xf32> to vector<4x2x128xf32>
    %cst_19 = arith.constant dense<0xFF800000> : vector<4x128xf32>
    %47 = vector.multi_reduction <maximumf>, %46, %cst_19 [1] : vector<4x2x128xf32> to vector<4x128xf32>
    %48 = arith.addf %43, %47 : vector<4x128xf32>
    %49 = vector.extract_strided_slice %45 {offsets = [0, 1, 0], sizes = [4, 3, 128], strides = [1, 1, 1]} : vector<4x8x128xf32> to vector<4x3x128xf32>
    %cst_20 = arith.constant dense<0xFF800000> : vector<4x128xf32>
    %50 = vector.multi_reduction <maximumf>, %49, %cst_20 [1] : vector<4x3x128xf32> to vector<4x128xf32>
    %51 = arith.addf %48, %50 : vector<4x128xf32>
    %52 = vector.extract_strided_slice %45 {offsets = [0, 3, 0], sizes = [4, 3, 128], strides = [1, 1, 1]} : vector<4x8x128xf32> to vector<4x3x128xf32>
    %cst_21 = arith.constant dense<0xFF800000> : vector<4x128xf32>
    %53 = vector.multi_reduction <maximumf>, %52, %cst_21 [1] : vector<4x3x128xf32> to vector<4x128xf32>
    %54 = arith.addf %51, %53 : vector<4x128xf32>
    %55 = vector.extract_strided_slice %45 {offsets = [0, 5, 0], sizes = [4, 3, 128], strides = [1, 1, 1]} : vector<4x8x128xf32> to vector<4x3x128xf32>
    %cst_22 = arith.constant dense<0xFF800000> : vector<4x128xf32>
    %56 = vector.multi_reduction <maximumf>, %55, %cst_22 [1] : vector<4x3x128xf32> to vector<4x128xf32>
    %57 = arith.addf %54, %56 : vector<4x128xf32>
    %cst_23 = arith.constant 6.250000e-02 : f32
    %58 = vector.broadcast %cst_23 : f32 to vector<4x128xf32>
    %59 = arith.mulf %57, %58 : vector<4x128xf32>
    %60 = vector.extract_strided_slice %59 {offsets = [0, 0], sizes = [2, 128], strides = [1, 1]} : vector<4x128xf32> to vector<2x128xf32>
    %61 = vector.extract_strided_slice %59 {offsets = [2, 0], sizes = [2, 128], strides = [1, 1]} : vector<4x128xf32> to vector<2x128xf32>
    %c0_24 = arith.constant 0 : index
    %c0_25 = arith.constant 0 : index
    %62 = vector.load %arg3[%c0_24, %c0_25] : memref<1x128xf32, #tpu.memory_space<vmem>>, vector<1x128xf32>
    %c0_26 = arith.constant 0 : index
    %c0_27 = arith.constant 0 : index
    %63 = vector.load %arg1[%c0_26, %c0_27] : memref<128x128xf32, #tpu.memory_space<vmem>>, vector<128x128xf32>
    %cst_28 = arith.constant dense<0.000000e+00> : vector<2x128xf32>
    %64 = tpu.matmul %60, %63, %cst_28 {dimension_numbers = #tpu.dot_dimension_numbers<[1], [0], [0], [1], [0, 0, 1, 1], [], []>} : vector<2x128xf32>, vector<128x128xf32>, vector<2x128xf32> -> vector<2x128xf32>
    %65 = vector.broadcast %62 : vector<1x128xf32> to vector<2x128xf32>
    %66 = arith.addf %64, %65 : vector<2x128xf32>
    %67 = math.tanh %66 : vector<2x128xf32>
    %c0_29 = arith.constant 0 : index
    %c0_30 = arith.constant 0 : index
    %68 = vector.load %arg1[%c0_29, %c0_30] : memref<128x128xf32, #tpu.memory_space<vmem>>, vector<128x128xf32>
    %cst_31 = arith.constant dense<0.000000e+00> : vector<2x128xf32>
    %69 = tpu.matmul %61, %68, %cst_31 {dimension_numbers = #tpu.dot_dimension_numbers<[1], [0], [0], [1], [0, 0, 1, 1], [], []>} : vector<2x128xf32>, vector<128x128xf32>, vector<2x128xf32> -> vector<2x128xf32>
    %c0_32 = arith.constant 0 : index
    %c0_33 = arith.constant 0 : index
    %70 = vector.load %arg2[%c0_32, %c0_33] : memref<128x128xf32, #tpu.memory_space<vmem>>, vector<128x128xf32>
    %cst_34 = arith.constant dense<0.000000e+00> : vector<2x128xf32>
    %71 = tpu.matmul %67, %70, %cst_34 {dimension_numbers = #tpu.dot_dimension_numbers<[1], [0], [0], [1], [0, 0, 1, 1], [], []>} : vector<2x128xf32>, vector<128x128xf32>, vector<2x128xf32> -> vector<2x128xf32>
    %72 = arith.addf %69, %71 : vector<2x128xf32>
    %73 = vector.broadcast %62 : vector<1x128xf32> to vector<2x128xf32>
    %74 = arith.addf %72, %73 : vector<2x128xf32>
    %75 = math.tanh %74 : vector<2x128xf32>
    %c0_35 = arith.constant 0 : index
    %c0_36 = arith.constant 0 : index
    %76 = vector.load %arg4[%c0_35, %c0_36] : memref<128x8xf32, #tpu.memory_space<vmem>>, vector<128x8xf32>
    %cst_37 = arith.constant dense<0.000000e+00> : vector<2x8xf32>
    %77 = tpu.matmul %75, %76, %cst_37 {dimension_numbers = #tpu.dot_dimension_numbers<[1], [0], [0], [1], [0, 0, 1, 1], [], []>} : vector<2x128xf32>, vector<128x8xf32>, vector<2x8xf32> -> vector<2x8xf32>
    %c0_38 = arith.constant 0 : index
    %c0_39 = arith.constant 0 : index
    %78 = vector.load %arg5[%c0_38, %c0_39] : memref<1x8xf32, #tpu.memory_space<vmem>>, vector<1x8xf32>
    %79 = vector.broadcast %78 : vector<1x8xf32> to vector<2x8xf32>
    %80 = arith.addf %77, %79 : vector<2x8xf32>
    %81 = arith.negf %80 : vector<2x8xf32>
    %82 = math.exp %81 : vector<2x8xf32>
    %cst_40 = arith.constant 1.000000e+00 : f32
    %83 = vector.broadcast %cst_40 : f32 to vector<2x8xf32>
    %84 = arith.addf %83, %82 : vector<2x8xf32>
    %85 = arith.divf %83, %84 : vector<2x8xf32>
    %c0_41 = arith.constant 0 : index
    %c0_42 = arith.constant 0 : index
    %86 = vector.load %arg6[%c0_41, %c0_42] : memref<2x8xf32, #tpu.memory_space<vmem>>, vector<2x8xf32>
    tpu.vector_store %arg6[%c0_41, %c0_42], %85 {strides = array<i32>} : memref<2x8xf32, #tpu.memory_space<vmem>>, vector<2x8xf32>,
    return
  }
}

</mosaic_0001>

<llo_original>
// kernel: _lambda_.2
$region0: #{_lambda_.2}
  #allocation0 [shape = 'u32[]', space=smem, size = 0x4, offset = 0x4, fixed_abs, tag = 'smem constant byte address 0x4 - core index']
  #allocation1 [shape = 'u32[144,128]{1,0:T(1,128)}', space=vmem, size = 0x12000, scoped, tag = 'internal scratch']
  %s0 = inlined_call_operand.vmem [shape: bf16[256,256], index: 0, kind: input, shape index: {}]
  %s1 = inlined_call_operand.vmem [shape: bf16[256,128], index: 1, kind: input, shape index: {}]
  %s2 = inlined_call_operand.vmem [shape: f32[1,128], index: 2, kind: input, shape index: {}]
  %s3 = inlined_call_operand.vmem [shape: f32[256,128], index: 3, kind: output, shape index: {}]
  %s4 = sld [smem:[#allocation0]]
  $region45: #{_lambda_.2} parent=0
    _
  %s6 = ssub.s32 1, %s4
  %s7 = scalar_select 0, %s6, %s4
  loop: start=0, step=1, limit=4
  $region2: #{_lambda_.2} parent=0 // loop_pre_header
    _
  $region3: #{_lambda_.2} parent=0 // loop_header
    %s9 = sphi 0, %s13
    %p10 = scmp.ge.s32.totalorder %s9, 4
    %s19 = sphi 0, %s21
    %s22 = sphi 0, %s19
    %s23 = sphi 0, %s22
    %s39 = sphi 0, %s23
    %s43 = sphi 0, %s43
    %s45 = sphi 0, %s43
    %s46 = sphi 0, %s45
    %s60 = sphi 0, %s46
    %s64 = sphi 0, %s64
    %s66 = sphi 0, %s64
    %s67 = sphi 0, %s66
    %s81 = sphi 0, %s67
    %s87 = sphi 0, %s89
    %s90 = sphi 0, %s87
    %s91 = sphi 0, %s90
    %s107 = sphi 0, %s91
  $region4: #{_lambda_.2} parent=0 // loop_header_branch
    %12 = sbr.rel (%p10) target = $region8
  $region5: #{_lambda_.2} parent=0 // loop_body
    %s14 = ssub.s32 %s9, 1
    %s15 = ssub.s32 %s9, 2
    %s16 = sadd.s32 %s9, 1
    %s17 = ssub.s32 %s9, %s16
    %p18 = scmp.eq.s32.totalorder %s17, 0
    %s20 = sadd.s32 %s19, 1
    %s21 = scalar_select %p18, %s19, %s20
    %p24 = pneg %p18
    %p25 = scmp.eq.s32.totalorder %s9, 1
    %p26 = por %p24, %p25
    %p27 = scmp.ne.s32.totalorder %s19, %s22
    %p28 = scmp.eq.s32.totalorder %s9, 0
    %p29 = por %p27, %p28
    %p30 = scmp.ne.s32.totalorder %s19, %s22
    %p31 = scmp.eq.s32.totalorder %s14, 1
    %p32 = por %p30, %p31
    %p33 = scmp.ne.s32.totalorder %s22, %s23
    %p34 = scmp.eq.s32.totalorder %s14, 0
    %p35 = por %p33, %p34
    %p36 = scmp.ne.s32.totalorder %s22, %s23
    %p37 = scmp.eq.s32.totalorder %s15, 1
    %p38 = por %p36, %p37
    %p40 = scmp.ne.s32.totalorder %s23, %s39
    %p41 = scmp.eq.s32.totalorder %s15, 0
    %p42 = por %p40, %p41
    %s44 = sadd.s32 %s43, 1
    %p47 = scmp.eq.s32.totalorder %s9, 1
    %p48 = scmp.ne.s32.totalorder %s43, %s45
    %p49 = scmp.eq.s32.totalorder %s9, 0
    %p50 = por %p48, %p49
    %p51 = scmp.ne.s32.totalorder %s43, %s45
    %p52 = scmp.eq.s32.totalorder %s14, 1
    %p53 = por %p51, %p52
    %p54 = scmp.ne.s32.totalorder %s45, %s46
    %p55 = scmp.eq.s32.totalorder %s14, 0
    %p56 = por %p54, %p55
    %p57 = scmp.ne.s32.totalorder %s45, %s46
    %p58 = scmp.eq.s32.totalorder %s15, 1
    %p59 = por %p57, %p58
    %p61 = scmp.ne.s32.totalorder %s46, %s60
    %p62 = scmp.eq.s32.totalorder %s15, 0
    %p63 = por %p61, %p62
    %s65 = sadd.s32 %s64, 1
    %p68 = scmp.eq.s32.totalorder %s9, 1
    %p69 = scmp.ne.s32.totalorder %s64, %s66
    %p70 = scmp.eq.s32.totalorder %s9, 0
    %p71 = por %p69, %p70
    %p72 = scmp.ne.s32.totalorder %s64, %s66
    %p73 = scmp.eq.s32.totalorder %s14, 1
    %p74 = por %p72, %p73
    %p75 = scmp.ne.s32.totalorder %s66, %s67
    %p76 = scmp.eq.s32.totalorder %s14, 0
    %p77 = por %p75, %p76
    %p78 = scmp.ne.s32.totalorder %s66, %s67
    %p79 = scmp.eq.s32.totalorder %s15, 1
    %p80 = por %p78, %p79
    %p82 = scmp.ne.s32.totalorder %s67, %s81
    %p83 = scmp.eq.s32.totalorder %s15, 0
    %p84 = por %p82, %p83
    %s85 = ssub.s32 %s9, %s16
    %p86 = scmp.eq.s32.totalorder %s85, 0
    %s88 = sadd.s32 %s87, 1
    %s89 = scalar_select %p86, %s87, %s88
    %p92 = pneg %p86
    %p93 = scmp.eq.s32.totalorder %s9, 1
    %p94 = por %p92, %p93
    %p95 = scmp.ne.s32.totalorder %s87, %s90
    %p96 = scmp.eq.s32.totalorder %s9, 0
    %p97 = por %p95, %p96
    %p98 = scmp.ne.s32.totalorder %s87, %s90
    %p99 = scmp.eq.s32.totalorder %s14, 1
    %p100 = por %p98, %p99
    %p101 = scmp.ne.s32.totalorder %s90, %s91
    %p102 = scmp.eq.s32.totalorder %s14, 0
    %p103 = por %p101, %p102
    %p104 = scmp.ne.s32.totalorder %s90, %s91
    %p105 = scmp.eq.s32.totalorder %s15, 1
    %p106 = por %p104, %p105
    %p108 = scmp.ne.s32.totalorder %s91, %s107
    %p109 = scmp.eq.s32.totalorder %s15, 0
    %p110 = por %p108, %p109
    %p111 = scmp.le.s32.totalorder 1, %s9
    %p112 = scmp.lt.s32.totalorder %s9, 3
    %p113 = pnand %p111, %p112
    %p114 = pneg %p113
    // Predicated region
    $region9: #{_lambda_.2} parent=5 // pred_check
      _
    $region10: #{_lambda_.2} parent=5 // pred_check_branch
      %116 = sbr.rel (%p113) target = $region12
    $region11: #{_lambda_.2} parent=5 // pred_region
      %s117 = ssub.s32 %s9, 1
      // Predicated region
      $region13: #{_lambda_.2} parent=11 // pred_check
        %p118 = pneg %p56
      $region14: #{_lambda_.2} parent=11 // pred_check_branch
        %120 = sbr.rel (%p118) target = $region16
      $region15: #{_lambda_.2} parent=11 // pred_region
        _
      $region16: #{_lambda_.2} parent=11 // pred_fallthru
        _
      // Predicated region
      $region17: #{_lambda_.2} parent=11 // pred_check
        %p121 = pneg %p77
      $region18: #{_lambda_.2} parent=11 // pred_check_branch
        %123 = sbr.rel (%p121) target = $region20
      $region19: #{_lambda_.2} parent=11 // pred_region
        _
      $region20: #{_lambda_.2} parent=11 // pred_fallthru
        _
    $region12: #{_lambda_.2} parent=5 // pred_fallthru
      _
    %p124 = scmp.lt.s32.totalorder %s9, 2
    // Predicated region
    $region21: #{_lambda_.2} parent=5 // pred_check
      %p125 = pneg %p124
    $region22: #{_lambda_.2} parent=5 // pred_check_branch
      %127 = sbr.rel (%p125) target = $region24
    $region23: #{_lambda_.2} parent=5 // pred_region
      // Predicated region
      $region25: #{_lambda_.2} parent=23 // pred_check
        %p128 = pneg %p29
      $region26: #{_lambda_.2} parent=23 // pred_check_branch
        %130 = sbr.rel (%p128) target = $region28
      $region27: #{_lambda_.2} parent=23 // pred_region
        %s131 = smul.u32 16, %s9
        %p132 = scmp.lt.s32.totalorder %s131, 31
        %s133 = scalar_select %p132, %s131, 31
        %s134 = smul.addr %s133, 2
        %s135 = smul.addr %s134, 4
        %s136 = scalar_lea.vmem %s0, %s135
        %s137 = smul.u32 16, %s9
      $region28: #{_lambda_.2} parent=23 // pred_fallthru
        _
    $region24: #{_lambda_.2} parent=5 // pred_fallthru
      _
    %p138 = scmp.le.s32.totalorder 1, %s9
    %p139 = scmp.lt.s32.totalorder %s9, 3
    %p140 = pnand %p138, %p139
    %p141 = pneg %p140
    // Predicated region
    $region29: #{_lambda_.2} parent=5 // pred_check
      _
    $region30: #{_lambda_.2} parent=5 // pred_check_branch
      %143 = sbr.rel (%p140) target = $region32
    $region31: #{_lambda_.2} parent=5 // pred_region
      %s144 = ssub.s32 %s9, 1
      %s145 = smul.u32 16, %s14
      %p146 = scmp.lt.s32.totalorder %s145, 31
      %s147 = scalar_select %p146, %s145, 31
      %s148 = smul.addr %s147, 2
      %s149 = smul.addr %s148, 4
      %s150 = scalar_lea.vmem %s0, %s149
      %p151 = pneg %p35
      %p152 = pneg %p32
      %p153 = pneg %p56
      %p154 = pneg %p53
      %p155 = pneg %p77
      %p156 = pneg %p74
      %p157 = pneg %p103
      %p158 = pneg %p100
      %s159 = smul.u32 16, %s14
      %p160 = scmp.lt.s32.totalorder %s159, 31
      %s161 = scalar_select %p160, %s159, 31
      %s162 = smul.addr %s161, 8
      %s163 = scalar_lea.vmem %s3, %s162
      %s164 = smul.u32 16, %s14
      %p165 = scmp.lt.s32.totalorder %s164, 31
      %s166 = scalar_select %p165, %s164, 31
      %s167 = smul.addr %s166, 2
      %s168 = smul.addr %s167, 4
      %s169 = scalar_lea.vmem %s0, %s168
      %s170 = smul.u32 16, %s14
      %s171 = smul.u32 16, %s14
      %p172 = scmp.lt.s32.totalorder %s171, 31
      %s173 = scalar_select %p172, %s171, 31
      %s174 = smul.addr %s173, 8
      %s175 = scalar_lea.vmem %s3, %s174
      %s176 = smul.u32 16, %s14
      %v178 = vld [vmem:[%s169] sm:$0xff]
      %v179 = vld [vmem:[%s169 + $0x8] sm:$0xff]
      %v180 = vld [vmem:[%s169 + $0x10] sm:$0xff]
      %v181 = vld [vmem:[%s169 + $0x18] sm:$0xff]
      %v182 = vld [vmem:[%s169 + $0x20] sm:$0xff]
      %v183 = vld [vmem:[%s169 + $0x28] sm:$0xff]
      %v184 = vld [vmem:[%s169 + $0x30] sm:$0xff]
      %v185 = vld [vmem:[%s169 + $0x38] sm:$0xff]
      %v186 = vld [vmem:[%s169 + $0x40] sm:$0xff]
      %v187 = vld [vmem:[%s169 + $0x48] sm:$0xff]
      %v188 = vld [vmem:[%s169 + $0x50] sm:$0xff]
      %v189 = vld [vmem:[%s169 + $0x58] sm:$0xff]
      %v190 = vld [vmem:[%s169 + $0x60] sm:$0xff]
      %v191 = vld [vmem:[%s169 + $0x68] sm:$0xff]
      %v192 = vld [vmem:[%s169 + $0x70] sm:$0xff]
      %v193 = vld [vmem:[%s169 + $0x78] sm:$0xff]
      %v194 = vld [vmem:[%s1] sm:$0xf]
      %v195 = vld [vmem:[%s1 + $0x4] sm:$0xf]
      %v196 = vld [vmem:[%s1 + $0x8] sm:$0xf]
      %v197 = vld [vmem:[%s1 + $0xc] sm:$0xf]
      %v198 = vld [vmem:[%s1 + $0x10] sm:$0xf]
      %v199 = vld [vmem:[%s1 + $0x14] sm:$0xf]
      %v200 = vld [vmem:[%s1 + $0x18] sm:$0xf]
      %v201 = vld [vmem:[%s1 + $0x1c] sm:$0xf]
      %v202 = vld [vmem:[%s1 + $0x20] sm:$0xf]
      %v203 = vld [vmem:[%s1 + $0x24] sm:$0xf]
      %v204 = vld [vmem:[%s1 + $0x28] sm:$0xf]
      %v205 = vld [vmem:[%s1 + $0x2c] sm:$0xf]
      %v206 = vld [vmem:[%s1 + $0x30] sm:$0xf]
      %v207 = vld [vmem:[%s1 + $0x34] sm:$0xf]
      %v208 = vld [vmem:[%s1 + $0x38] sm:$0xf]
      %v209 = vld [vmem:[%s1 + $0x3c] sm:$0xf]
      %v210 = vld [vmem:[%s1 + $0x40] sm:$0xf]
      %v211 = vld [vmem:[%s1 + $0x44] sm:$0xf]
      %v212 = vld [vmem:[%s1 + $0x48] sm:$0xf]
      %v213 = vld [vmem:[%s1 + $0x4c] sm:$0xf]
      %v214 = vld [vmem:[%s1 + $0x50] sm:$0xf]
      %v215 = vld [vmem:[%s1 + $0x54] sm:$0xf]
      %v216 = vld [vmem:[%s1 + $0x58] sm:$0xf]
      %v217 = vld [vmem:[%s1 + $0x5c] sm:$0xf]
      %v218 = vld [vmem:[%s1 + $0x60] sm:$0xf]
      %v219 = vld [vmem:[%s1 + $0x64] sm:$0xf]
      %v220 = vld [vmem:[%s1 + $0x68] sm:$0xf]
      %v221 = vld [vmem:[%s1 + $0x6c] sm:$0xf]
      %v222 = vld [vmem:[%s1 + $0x70] sm:$0xf]
      %v223 = vld [vmem:[%s1 + $0x74] sm:$0xf]
      %v224 = vld [vmem:[%s1 + $0x78] sm:$0xf]
      %v225 = vld [vmem:[%s1 + $0x7c] sm:$0xf]
      %v226 = vld [vmem:[%s2] sm:$0x1]
      %v228 = vlaneseq
      %v229 = vshrl.u32 %v228, 7
      %v230 = vsub.s32 0, %v229
      %v231 = vrot.slane %v226, %v230
      %v249 = vunpack.c.l.b16 %v178
      %v250 = vunpack.c.h.b16 %v178
      %v251 = vunpack.c.l.b16 %v179
      %v252 = vunpack.c.h.b16 %v179
      %v253 = vunpack.c.l.b16 %v180
      %v254 = vunpack.c.h.b16 %v180
      %v255 = vunpack.c.l.b16 %v181
      %v256 = vunpack.c.h.b16 %v181
      %v257 = vunpack.c.l.b16 %v182
      %v258 = vunpack.c.h.b16 %v182
      %v259 = vunpack.c.l.b16 %v183
      %v260 = vunpack.c.h.b16 %v183
      %v261 = vunpack.c.l.b16 %v184
      %v262 = vunpack.c.h.b16 %v184
      %v263 = vunpack.c.l.b16 %v185
      %v264 = vunpack.c.h.b16 %v185
      %v265 = vunpack.c.l.b16 %v186
      %v266 = vunpack.c.h.b16 %v186
      %v267 = vunpack.c.l.b16 %v187
      %v268 = vunpack.c.h.b16 %v187
      %v269 = vunpack.c.l.b16 %v188
      %v270 = vunpack.c.h.b16 %v188
      %v271 = vunpack.c.l.b16 %v189
      %v272 = vunpack.c.h.b16 %v189
      %v273 = vunpack.c.l.b16 %v190
      %v274 = vunpack.c.h.b16 %v190
      %v275 = vunpack.c.l.b16 %v191
      %v276 = vunpack.c.h.b16 %v191
      %v277 = vunpack.c.l.b16 %v192
      %v278 = vunpack.c.h.b16 %v192
      %v279 = vunpack.c.l.b16 %v193
      %v280 = vunpack.c.h.b16 %v193
      %v281 = vpack.c.b16 %v251, %v249
      %v282 = vpack.c.b16 %v252, %v250
      %v283 = vpack.c.b16 %v255, %v253
      %v284 = vpack.c.b16 %v256, %v254
      %v285 = vpack.c.b16 %v259, %v257
      %v286 = vpack.c.b16 %v260, %v258
      %v287 = vpack.c.b16 %v263, %v261
      %v288 = vpack.c.b16 %v264, %v262
      %v289 = vpack.c.b16 %v267, %v265
      %v290 = vpack.c.b16 %v268, %v266
      %v291 = vpack.c.b16 %v271, %v269
      %v292 = vpack.c.b16 %v272, %v270
      %v293 = vpack.c.b16 %v275, %v273
      %v294 = vpack.c.b16 %v276, %v274
      %v295 = vpack.c.b16 %v279, %v277
      %v296 = vpack.c.b16 %v280, %v278
      %v345 = vunpack.c.l.b16 %v194
      %v346 = vunpack.c.l.b16 %v195
      %v347 = vunpack.c.l.b16 %v196
      %v348 = vunpack.c.l.b16 %v197
      %v349 = vunpack.c.l.b16 %v198
      %v350 = vunpack.c.l.b16 %v199
      %v351 = vunpack.c.l.b16 %v200
      %v352 = vunpack.c.l.b16 %v201
      %v353 = vunpack.c.l.b16 %v202
      %v354 = vunpack.c.l.b16 %v203
      %v355 = vunpack.c.l.b16 %v204
      %v356 = vunpack.c.l.b16 %v205
      %v357 = vunpack.c.l.b16 %v206
      %v358 = vunpack.c.l.b16 %v207
      %v359 = vunpack.c.l.b16 %v208
      %v360 = vunpack.c.l.b16 %v209
      %v361 = vunpack.c.l.b16 %v210
      %v362 = vunpack.c.l.b16 %v211
      %v363 = vunpack.c.l.b16 %v212
      %v364 = vunpack.c.l.b16 %v213
      %v365 = vunpack.c.l.b16 %v214
      %v366 = vunpack.c.l.b16 %v215
      %v367 = vunpack.c.l.b16 %v216
      %v368 = vunpack.c.l.b16 %v217
      %v369 = vunpack.c.l.b16 %v218
      %v370 = vunpack.c.l.b16 %v219
      %v371 = vunpack.c.l.b16 %v220
      %v372 = vunpack.c.l.b16 %v221
      %v373 = vunpack.c.l.b16 %v222
      %v374 = vunpack.c.l.b16 %v223
      %v375 = vunpack.c.l.b16 %v224
      %v376 = vunpack.c.l.b16 %v225
      %v377 = vpack.c.b16 %v346, %v345
      %v378 = vpack.c.b16 %v348, %v347
      %v379 = vpack.c.b16 %v350, %v349
      %v380 = vpack.c.b16 %v352, %v351
      %v381 = vpack.c.b16 %v354, %v353
      %v382 = vpack.c.b16 %v356, %v355
      %v383 = vpack.c.b16 %v358, %v357
      %v384 = vpack.c.b16 %v360, %v359
      %v385 = vpack.c.b16 %v362, %v361
      %v386 = vpack.c.b16 %v364, %v363
      %v387 = vpack.c.b16 %v366, %v365
      %v388 = vpack.c.b16 %v368, %v367
      %v389 = vpack.c.b16 %v370, %v369
      %v390 = vpack.c.b16 %v372, %v371
      %v391 = vpack.c.b16 %v374, %v373
      %v392 = vpack.c.b16 %v376, %v375
      %409 = vmatprep.subr.bf16.mxu0 0
      %410 = vmatpush1.bf16.msra.mxu0 %v384
      %411 = vmatprep.subr.bf16.mxu0 0
      %412 = vmatpush1.bf16.msra.mxu0 %v383
      %413 = vmatprep.subr.bf16.mxu0 0
      %414 = vmatpush1.bf16.msra.mxu0 %v382
      %415 = vmatprep.subr.bf16.mxu0 0
      %416 = vmatpush1.bf16.msra.mxu0 %v381
      %417 = vmatprep.subr.bf16.mxu0 0
      %418 = vmatpush1.bf16.msra.mxu0 %v380
      %419 = vmatprep.subr.bf16.mxu0 0
      %420 = vmatpush1.bf16.msra.mxu0 %v379
      %421 = vmatprep.subr.bf16.mxu0 0
      %422 = vmatpush1.bf16.msra.mxu0 %v378
      %423 = vmatprep.subr.bf16.mxu0 0
      %424 = vmatpush1.bf16.msra.mxu0 %v377
      %425 = vmatprep.subr.bf16.mxu0 0
      %426 = vmatpush2.bf16.msra.mxu0 %v392
      %427 = vmatprep.subr.bf16.mxu0 0
      %428 = vmatpush2.bf16.msra.mxu0 %v391
      %429 = vmatprep.subr.bf16.mxu0 0
      %430 = vmatpush2.bf16.msra.mxu0 %v390
      %431 = vmatprep.subr.bf16.mxu0 0
      %432 = vmatpush2.bf16.msra.mxu0 %v389
      %433 = vmatprep.subr.bf16.mxu0 0
      %434 = vmatpush2.bf16.msra.mxu0 %v388
      %435 = vmatprep.subr.bf16.mxu0 0
      %436 = vmatpush2.bf16.msra.mxu0 %v387
      %437 = vmatprep.subr.bf16.mxu0 0
      %438 = vmatpush2.bf16.msra.mxu0 %v386
      %439 = vmatprep.subr.bf16.mxu0 0
      %440 = vmatpush2.bf16.msra.mxu0 %v385
      %441 = vmatprep.mubr.bf16.mxu0 %v282
      %442 = vmatmul.mubr.bf16.gmra.mxu0 %v281
      %v443 = vpop.f32.mrf.mxu0
      %v444 = vadd.f32 %v231, %v443
      %v445 = vpop.f32.mrf.mxu0
      %v446 = vpop.f32.mrf.mxu0
      %v447 = vadd.f32 %v231, %v446
      %v448 = vpop.f32.mrf.mxu0
      %449 = vmatprep.mubr.bf16.mxu0 %v284
      %450 = vmatmul.mubr.bf16.gmra.mxu0 %v283
      %v451 = vpop.f32.mrf.mxu0
      %v452 = vadd.f32 %v231, %v451
      %v453 = vpop.f32.mrf.mxu0
      %v454 = vpop.f32.mrf.mxu0
      %v455 = vadd.f32 %v231, %v454
      %v456 = vpop.f32.mrf.mxu0
      %457 = vmatprep.mubr.bf16.mxu0 %v286
      %458 = vmatmul.mubr.bf16.gmra.mxu0 %v285
      %v459 = vpop.f32.mrf.mxu0
      %v460 = vadd.f32 %v231, %v459
      %v461 = vpop.f32.mrf.mxu0
      %v462 = vpop.f32.mrf.mxu0
      %v463 = vadd.f32 %v231, %v462
      %v464 = vpop.f32.mrf.mxu0
      %465 = vmatprep.mubr.bf16.mxu0 %v288
      %466 = vmatmul.mubr.bf16.gmra.mxu0 %v287
      %v467 = vpop.f32.mrf.mxu0
      %v468 = vadd.f32 %v231, %v467
      %v469 = vpop.f32.mrf.mxu0
      %v470 = vpop.f32.mrf.mxu0
      %v471 = vadd.f32 %v231, %v470
      %v472 = vpop.f32.mrf.mxu0
      %473 = vmatprep.mubr.bf16.mxu0 %v290
      %474 = vmatmul.mubr.bf16.gmra.mxu0 %v289
      %v475 = vpop.f32.mrf.mxu0
      %v476 = vadd.f32 %v231, %v475
      %v477 = vpop.f32.mrf.mxu0
      %v478 = vpop.f32.mrf.mxu0
      %v479 = vadd.f32 %v231, %v478
      %v480 = vpop.f32.mrf.mxu0
      %481 = vmatprep.mubr.bf16.mxu0 %v292
      %482 = vmatmul.mubr.bf16.gmra.mxu0 %v291
      %v483 = vpop.f32.mrf.mxu0
      %v484 = vadd.f32 %v231, %v483
      %v485 = vpop.f32.mrf.mxu0
      %v486 = vpop.f32.mrf.mxu0
      %v487 = vadd.f32 %v231, %v486
      %v488 = vpop.f32.mrf.mxu0
      %489 = vmatprep.mubr.bf16.mxu0 %v294
      %490 = vmatmul.mubr.bf16.gmra.mxu0 %v293
      %v491 = vpop.f32.mrf.mxu0
      %v492 = vadd.f32 %v231, %v491
      %v493 = vpop.f32.mrf.mxu0
      %v494 = vpop.f32.mrf.mxu0
      %v495 = vadd.f32 %v231, %v494
      %v496 = vpop.f32.mrf.mxu0
      %497 = vmatprep.mubr.bf16.mxu0 %v296
      %498 = vmatmul.mubr.bf16.gmra.mxu0 %v295
      %v499 = vpop.f32.mrf.mxu0
      %v500 = vadd.f32 %v231, %v499
      %v501 = vpop.f32.mrf.mxu0
      %v502 = vpop.f32.mrf.mxu0
      %v503 = vadd.f32 %v231, %v502
      %v504 = vpop.f32.mrf.mxu0
      %505 = vdwg.mxu0
      %v506 = vmax.f32 %v444, 0.0
      %v507 = vmax.f32 %v447, 0.0
      %v508 = vmax.f32 %v452, 0.0
      %v509 = vmax.f32 %v455, 0.0
      %v510 = vmax.f32 %v460, 0.0
      %v511 = vmax.f32 %v463, 0.0
      %v512 = vmax.f32 %v468, 0.0
      %v513 = vmax.f32 %v471, 0.0
      %v514 = vmax.f32 %v476, 0.0
      %v515 = vmax.f32 %v479, 0.0
      %v516 = vmax.f32 %v484, 0.0
      %v517 = vmax.f32 %v487, 0.0
      %v518 = vmax.f32 %v492, 0.0
      %v519 = vmax.f32 %v495, 0.0
      %v520 = vmax.f32 %v500, 0.0
      %v521 = vmax.f32 %v503, 0.0
      %522 = vst [vmem:[%s175] sm:$0xff] %v506
      %523 = vst [vmem:[%s175 + $0x8] sm:$0xff] %v507
      %524 = vst [vmem:[%s175 + $0x10] sm:$0xff] %v508
      %525 = vst [vmem:[%s175 + $0x18] sm:$0xff] %v509
      %526 = vst [vmem:[%s175 + $0x20] sm:$0xff] %v510
      %527 = vst [vmem:[%s175 + $0x28] sm:$0xff] %v511
      %528 = vst [vmem:[%s175 + $0x30] sm:$0xff] %v512
      %529 = vst [vmem:[%s175 + $0x38] sm:$0xff] %v513
      %530 = vst [vmem:[%s175 + $0x40] sm:$0xff] %v514
      %531 = vst [vmem:[%s175 + $0x48] sm:$0xff] %v515
      %532 = vst [vmem:[%s175 + $0x50] sm:$0xff] %v516
      %533 = vst [vmem:[%s175 + $0x58] sm:$0xff] %v517
      %534 = vst [vmem:[%s175 + $0x60] sm:$0xff] %v518
      %535 = vst [vmem:[%s175 + $0x68] sm:$0xff] %v519
      %536 = vst [vmem:[%s175 + $0x70] sm:$0xff] %v520
      %537 = vst [vmem:[%s175 + $0x78] sm:$0xff] %v521
      %s538 = smul.u32 16, %s14
      %p539 = scmp.lt.s32.totalorder %s538, 31
      %s540 = scalar_select %p539, %s538, 31
      %s541 = smul.addr %s540, 8
      %s542 = scalar_lea.vmem %s3, %s541
      // Predicated region
      $region33: #{_lambda_.2} parent=31 // pred_check
        %p543 = pneg %p100
      $region34: #{_lambda_.2} parent=31 // pred_check_branch
        %545 = sbr.rel (%p543) target = $region36
      $region35: #{_lambda_.2} parent=31 // pred_region
        %s546 = smul.u32 16, %s14
      $region36: #{_lambda_.2} parent=31 // pred_fallthru
        _
    $region32: #{_lambda_.2} parent=5 // pred_fallthru
      _
    %p547 = scmp.le.s32.totalorder 2, %s9
    // Predicated region
    $region37: #{_lambda_.2} parent=5 // pred_check
      %p548 = pneg %p547
    $region38: #{_lambda_.2} parent=5 // pred_check_branch
      %550 = sbr.rel (%p548) target = $region40
    $region39: #{_lambda_.2} parent=5 // pred_region
      %s551 = ssub.s32 %s9, 2
      // Predicated region
      $region41: #{_lambda_.2} parent=39 // pred_check
        %p552 = pneg %p106
      $region42: #{_lambda_.2} parent=39 // pred_check_branch
        %554 = sbr.rel (%p552) target = $region44
      $region43: #{_lambda_.2} parent=39 // pred_region
        %s555 = smul.u32 16, %s15
        %p556 = scmp.lt.s32.totalorder %s555, 31
        %s557 = scalar_select %p556, %s555, 31
        %s558 = smul.addr %s557, 8
        %s559 = scalar_lea.vmem %s3, %s558
      $region44: #{_lambda_.2} parent=39 // pred_fallthru
        _
    $region40: #{_lambda_.2} parent=5 // pred_fallthru
      _
  $region6: #{_lambda_.2} parent=0 // loop_footer
    %s13 = sadd.s32 1, %s9
  $region7: #{_lambda_.2} parent=0 // loop_footer_branch
    %8 = sbr.rel target = $region3
  $region8: #{_lambda_.2} parent=0 // loop_exit
    _

// kernel: _lambda_.3
$region0: #{_lambda_.3}
  #allocation0 [shape = 'u32[]', space=smem, size = 0x4, offset = 0x4, fixed_abs, tag = 'smem constant byte address 0x4 - core index']
  #allocation1 [shape = 'u32[144,128]{1,0:T(1,128)}', space=vmem, size = 0x12000, scoped, tag = 'internal scratch']
  %s0 = inlined_call_operand.vmem [shape: f32[4,8,8,128], index: 0, kind: input, shape index: {}]
  %s1 = inlined_call_operand.vmem [shape: f32[128,128], index: 1, kind: input, shape index: {}]
  %s2 = inlined_call_operand.vmem [shape: f32[128,128], index: 2, kind: input, shape index: {}]
  %s3 = inlined_call_operand.vmem [shape: f32[1,128], index: 3, kind: input, shape index: {}]
  %s4 = inlined_call_operand.vmem [shape: f32[128,8], index: 4, kind: input, shape index: {}]
  %s5 = inlined_call_operand.vmem [shape: f32[1,8], index: 5, kind: input, shape index: {}]
  %s6 = inlined_call_operand.hbm [shape: f32[2,8], index: 6, kind: output, shape index: {}]
  %s7 = sld [smem:[#allocation0]]
  $region34: #{_lambda_.3} parent=0
    _
  %s9 = ssub.s32 1, %s7
  %s10 = scalar_select 0, %s9, %s7
  $region1: #{_lambda_.3} parent=0
    #allocation2 [shape = 'u8[1024]{0}', space=vmem, size = 0x400, scoped, tag = 'output window, operand 0, single buffered']
    #allocation3 [shape = 's32[1]{0}', space=sflag, size = 0x4, scoped, tag = 'scoped memory for _lambda_.3']
    %11 = vsyncpa [#allocation3], 0
    // Predicated region
    $region2: #{_lambda_.3} parent=1 // pred_check
      _
    $region3: #{_lambda_.3} parent=1 // pred_check_branch
      %13 = sbr.rel (0) target = $region5
    $region4: #{_lambda_.3} parent=1 // pred_region
      _
    $region5: #{_lambda_.3} parent=1 // pred_fallthru
      _
    // Predicated region
    $region6: #{_lambda_.3} parent=1 // pred_check
      _
    $region7: #{_lambda_.3} parent=1 // pred_check_branch
      %15 = sbr.rel (0) target = $region9
    $region8: #{_lambda_.3} parent=1 // pred_region
      _
    $region9: #{_lambda_.3} parent=1 // pred_fallthru
      _
    // Predicated region
    $region10: #{_lambda_.3} parent=1 // pred_check
      _
    $region11: #{_lambda_.3} parent=1 // pred_check_branch
      %17 = sbr.rel (0) target = $region13
    $region12: #{_lambda_.3} parent=1 // pred_region
      _
    $region13: #{_lambda_.3} parent=1 // pred_fallthru
      _
    // Predicated region
    $region14: #{_lambda_.3} parent=1 // pred_check
      _
    $region15: #{_lambda_.3} parent=1 // pred_check_branch
      %19 = sbr.rel (0) target = $region17
    $region16: #{_lambda_.3} parent=1 // pred_region
      _
    $region17: #{_lambda_.3} parent=1 // pred_fallthru
      _
    // Predicated region
    $region18: #{_lambda_.3} parent=1 // pred_check
      _
    $region19: #{_lambda_.3} parent=1 // pred_check_branch
      %21 = sbr.rel (0) target = $region21
    $region20: #{_lambda_.3} parent=1 // pred_region
      _
    $region21: #{_lambda_.3} parent=1 // pred_fallthru
      _
    // Predicated region
    $region22: #{_lambda_.3} parent=1 // pred_check
      _
    $region23: #{_lambda_.3} parent=1 // pred_check_branch
      %23 = sbr.rel (0) target = $region25
    $region24: #{_lambda_.3} parent=1 // pred_region
      _
    $region25: #{_lambda_.3} parent=1 // pred_fallthru
      _
    %v24 = vld [vmem:[%s0] sm:$0xff]
    %v25 = vld [vmem:[%s0 + $0x8] sm:$0xff]
    %v26 = vld [vmem:[%s0 + $0x10] sm:$0xff]
    %v27 = vld [vmem:[%s0 + $0x18] sm:$0xff]
    %v28 = vld [vmem:[%s0 + $0x20] sm:$0xff]
    %v29 = vld [vmem:[%s0 + $0x28] sm:$0xff]
    %v30 = vld [vmem:[%s0 + $0x30] sm:$0xff]
    %v31 = vld [vmem:[%s0 + $0x38] sm:$0xff]
    %v32 = vld [vmem:[%s0 + $0x40] sm:$0xff]
    %v33 = vld [vmem:[%s0 + $0x48] sm:$0xff]
    %v34 = vld [vmem:[%s0 + $0x50] sm:$0xff]
    %v35 = vld [vmem:[%s0 + $0x58] sm:$0xff]
    %v36 = vld [vmem:[%s0 + $0x60] sm:$0xff]
    %v37 = vld [vmem:[%s0 + $0x68] sm:$0xff]
    %v38 = vld [vmem:[%s0 + $0x70] sm:$0xff]
    %v39 = vld [vmem:[%s0 + $0x78] sm:$0xff]
    %v40 = vld [vmem:[%s0 + $0x80] sm:$0xff]
    %v41 = vld [vmem:[%s0 + $0x88] sm:$0xff]
    %v42 = vld [vmem:[%s0 + $0x90] sm:$0xff]
    %v43 = vld [vmem:[%s0 + $0x98] sm:$0xff]
    %v44 = vld [vmem:[%s0 + $0xa0] sm:$0xff]
    %v45 = vld [vmem:[%s0 + $0xa8] sm:$0xff]
    %v46 = vld [vmem:[%s0 + $0xb0] sm:$0xff]
    %v47 = vld [vmem:[%s0 + $0xb8] sm:$0xff]
    %v48 = vld [vmem:[%s0 + $0xc0] sm:$0xff]
    %v49 = vld [vmem:[%s0 + $0xc8] sm:$0xff]
    %v50 = vld [vmem:[%s0 + $0xd0] sm:$0xff]
    %v51 = vld [vmem:[%s0 + $0xd8] sm:$0xff]
    %v52 = vld [vmem:[%s0 + $0xe0] sm:$0xff]
    %v53 = vld [vmem:[%s0 + $0xe8] sm:$0xff]
    %v54 = vld [vmem:[%s0 + $0xf0] sm:$0xff]
    %v55 = vld [vmem:[%s0 + $0xf8] sm:$0xff]
    %v56 = vmax.f32 %v24, %v25
    %v57 = vmax.f32 %v32, %v33
    %v58 = vmax.f32 %v40, %v41
    %v59 = vmax.f32 %v48, %v49
    %vm60 = vcmask 1041408
    %v61 = vsel %vm60, %v56, -inf
    %v62 = vrot.slane %v61, 4
    %v63 = vmax.f32 %v61, %v62
    %v64 = vrot.slane %v63, 2
    %v65 = vmax.f32 %v63, %v64
    %v66 = vrot.slane %v65, 1
    %v67 = vmax.f32 %v65, %v66
    %v68 = vsel %vm60, %v57, -inf
    %v69 = vrot.slane %v68, 4
    %v70 = vmax.f32 %v68, %v69
    %v71 = vrot.slane %v70, 2
    %v72 = vmax.f32 %v70, %v71
    %v73 = vrot.slane %v72, 1
    %v74 = vmax.f32 %v72, %v73
    %v75 = vsel %vm60, %v58, -inf
    %v76 = vrot.slane %v75, 4
    %v77 = vmax.f32 %v75, %v76
    %v78 = vrot.slane %v77, 2
    %v79 = vmax.f32 %v77, %v78
    %v80 = vrot.slane %v79, 1
    %v81 = vmax.f32 %v79, %v80
    %v82 = vsel %vm60, %v59, -inf
    %v83 = vrot.slane %v82, 4
    %v84 = vmax.f32 %v82, %v83
    %v85 = vrot.slane %v84, 2
    %v86 = vmax.f32 %v84, %v85
    %v87 = vrot.slane %v86, 1
    %v88 = vmax.f32 %v86, %v87
    %v89 = vadd.f32 %v67, 0.0
    %v90 = vadd.f32 %v74, 0.0
    %v91 = vadd.f32 %v81, 0.0
    %v92 = vadd.f32 %v88, 0.0
    %vm93 = vcmask 1043457
    %v94 = vsel %vm93, %v56, -inf
    %v95 = vrot.slane %v94, 4
    %v96 = vmax.f32 %v94, %v95
    %v97 = vrot.slane %v96, 2
    %v98 = vmax.f32 %v96, %v97
    %v99 = vrot.slane %v98, 1
    %v100 = vmax.f32 %v98, %v99
    %v101 = vsel %vm93, %v57, -inf
    %v102 = vrot.slane %v101, 4
    %v103 = vmax.f32 %v101, %v102
    %v104 = vrot.slane %v103, 2
    %v105 = vmax.f32 %v103, %v104
    %v106 = vrot.slane %v105, 1
    %v107 = vmax.f32 %v105, %v106
    %v108 = vsel %vm93, %v58, -inf
    %v109 = vrot.slane %v108, 4
    %v110 = vmax.f32 %v108, %v109
    %v111 = vrot.slane %v110, 2
    %v112 = vmax.f32 %v110, %v111
    %v113 = vrot.slane %v112, 1
    %v114 = vmax.f32 %v112, %v113
    %v115 = vsel %vm93, %v59, -inf
    %v116 = vrot.slane %v115, 4
    %v117 = vmax.f32 %v115, %v116
    %v118 = vrot.slane %v117, 2
    %v119 = vmax.f32 %v117, %v118
    %v120 = vrot.slane %v119, 1
    %v121 = vmax.f32 %v119, %v120
    %v122 = vadd.f32 %v89, %v100
    %v123 = vadd.f32 %v90, %v107
    %v124 = vadd.f32 %v91, %v114
    %v125 = vadd.f32 %v92, %v121
    %vm126 = vcmask 1045507
    %v127 = vsel %vm126, %v56, -inf
    %v128 = vrot.slane %v127, 4
    %v129 = vmax.f32 %v127, %v128
    %v130 = vrot.slane %v129, 2
    %v131 = vmax.f32 %v129, %v130
    %v132 = vrot.slane %v131, 1
    %v133 = vmax.f32 %v131, %v132
    %v134 = vsel %vm126, %v57, -inf
    %v135 = vrot.slane %v134, 4
    %v136 = vmax.f32 %v134, %v135
    %v137 = vrot.slane %v136, 2
    %v138 = vmax.f32 %v136, %v137
    %v139 = vrot.slane %v138, 1
    %v140 = vmax.f32 %v138, %v139
    %v141 = vsel %vm126, %v58, -inf
    %v142 = vrot.slane %v141, 4
    %v143 = vmax.f32 %v141, %v142
    %v144 = vrot.slane %v143, 2
    %v145 = vmax.f32 %v143, %v144
    %v146 = vrot.slane %v145, 1
    %v147 = vmax.f32 %v145, %v146
    %v148 = vsel %vm126, %v59, -inf
    %v149 = vrot.slane %v148, 4
    %v150 = vmax.f32 %v148, %v149
    %v151 = vrot.slane %v150, 2
    %v152 = vmax.f32 %v150, %v151
    %v153 = vrot.slane %v152, 1
    %v154 = vmax.f32 %v152, %v153
    %v155 = vadd.f32 %v122, %v133
    %v156 = vadd.f32 %v123, %v140
    %v157 = vadd.f32 %v124, %v147
    %v158 = vadd.f32 %v125, %v154
    %vm159 = vcmask 1047557
    %v160 = vsel %vm159, %v56, -inf
    %v161 = vrot.slane %v160, 4
    %v162 = vmax.f32 %v160, %v161
    %v163 = vrot.slane %v162, 2
    %v164 = vmax.f32 %v162, %v163
    %v165 = vrot.slane %v164, 1
    %v166 = vmax.f32 %v164, %v165
    %v167 = vsel %vm159, %v57, -inf
    %v168 = vrot.slane %v167, 4
    %v169 = vmax.f32 %v167, %v168
    %v170 = vrot.slane %v169, 2
    %v171 = vmax.f32 %v169, %v170
    %v172 = vrot.slane %v171, 1
    %v173 = vmax.f32 %v171, %v172
    %v174 = vsel %vm159, %v58, -inf
    %v175 = vrot.slane %v174, 4
    %v176 = vmax.f32 %v174, %v175
    %v177 = vrot.slane %v176, 2
    %v178 = vmax.f32 %v176, %v177
    %v179 = vrot.slane %v178, 1
    %v180 = vmax.f32 %v178, %v179
    %v181 = vsel %vm159, %v59, -inf
    %v182 = vrot.slane %v181, 4
    %v183 = vmax.f32 %v181, %v182
    %v184 = vrot.slane %v183, 2
    %v185 = vmax.f32 %v183, %v184
    %v186 = vrot.slane %v185, 1
    %v187 = vmax.f32 %v185, %v186
    %v188 = vadd.f32 %v155, %v166
    %v189 = vadd.f32 %v156, %v173
    %v190 = vadd.f32 %v157, %v180
    %v191 = vadd.f32 %v158, %v187
    %v192 = vmax.f32 %v25, %v26
    %v193 = vmax.f32 %v192, %v27
    %v194 = vmax.f32 %v33, %v34
    %v195 = vmax.f32 %v194, %v35
    %v196 = vmax.f32 %v41, %v42
    %v197 = vmax.f32 %v196, %v43
    %v198 = vmax.f32 %v49, %v50
    %v199 = vmax.f32 %v198, %v51
    %v200 = vsel %vm60, %v193, -inf
    %v201 = vrot.slane %v200, 4
    %v202 = vmax.f32 %v200, %v201
    %v203 = vrot.slane %v202, 2
    %v204 = vmax.f32 %v202, %v203
    %v205 = vrot.slane %v204, 1
    %v206 = vmax.f32 %v204, %v205
    %v207 = vsel %vm60, %v195, -inf
    %v208 = vrot.slane %v207, 4
    %v209 = vmax.f32 %v207, %v208
    %v210 = vrot.slane %v209, 2
    %v211 = vmax.f32 %v209, %v210
    %v212 = vrot.slane %v211, 1
    %v213 = vmax.f32 %v211, %v212
    %v214 = vsel %vm60, %v197, -inf
    %v215 = vrot.slane %v214, 4
    %v216 = vmax.f32 %v214, %v215
    %v217 = vrot.slane %v216, 2
    %v218 = vmax.f32 %v216, %v217
    %v219 = vrot.slane %v218, 1
    %v220 = vmax.f32 %v218, %v219
    %v221 = vsel %vm60, %v199, -inf
    %v222 = vrot.slane %v221, 4
    %v223 = vmax.f32 %v221, %v222
    %v224 = vrot.slane %v223, 2
    %v225 = vmax.f32 %v223, %v224
    %v226 = vrot.slane %v225, 1
    %v227 = vmax.f32 %v225, %v226
    %v228 = vadd.f32 %v188, %v206
    %v229 = vadd.f32 %v189, %v213
    %v230 = vadd.f32 %v190, %v220
    %v231 = vadd.f32 %v191, %v227
    %v232 = vsel %vm93, %v193, -inf
    %v233 = vrot.slane %v232, 4
    %v234 = vmax.f32 %v232, %v233
    %v235 = vrot.slane %v234, 2
    %v236 = vmax.f32 %v234, %v235
    %v237 = vrot.slane %v236, 1
    %v238 = vmax.f32 %v236, %v237
    %v239 = vsel %vm93, %v195, -inf
    %v240 = vrot.slane %v239, 4
    %v241 = vmax.f32 %v239, %v240
    %v242 = vrot.slane %v241, 2
    %v243 = vmax.f32 %v241, %v242
    %v244 = vrot.slane %v243, 1
    %v245 = vmax.f32 %v243, %v244
    %v246 = vsel %vm93, %v197, -inf
    %v247 = vrot.slane %v246, 4
    %v248 = vmax.f32 %v246, %v247
    %v249 = vrot.slane %v248, 2
    %v250 = vmax.f32 %v248, %v249
    %v251 = vrot.slane %v250, 1
    %v252 = vmax.f32 %v250, %v251
    %v253 = vsel %vm93, %v199, -inf
    %v254 = vrot.slane %v253, 4
    %v255 = vmax.f32 %v253, %v254
    %v256 = vrot.slane %v255, 2
    %v257 = vmax.f32 %v255, %v256
    %v258 = vrot.slane %v257, 1
    %v259 = vmax.f32 %v257, %v258
    %v260 = vadd.f32 %v228, %v238
    %v261 = vadd.f32 %v229, %v245
    %v262 = vadd.f32 %v230, %v252
    %v263 = vadd.f32 %v231, %v259
    %v264 = vsel %vm126, %v193, -inf
    %v265 = vrot.slane %v264, 4
    %v266 = vmax.f32 %v264, %v265
    %v267 = vrot.slane %v266, 2
    %v268 = vmax.f32 %v266, %v267
    %v269 = vrot.slane %v268, 1
    %v270 = vmax.f32 %v268, %v269
    %v271 = vsel %vm126, %v195, -inf
    %v272 = vrot.slane %v271, 4
    %v273 = vmax.f32 %v271, %v272
    %v274 = vrot.slane %v273, 2
    %v275 = vmax.f32 %v273, %v274
    %v276 = vrot.slane %v275, 1
    %v277 = vmax.f32 %v275, %v276
    %v278 = vsel %vm126, %v197, -inf
    %v279 = vrot.slane %v278, 4
    %v280 = vmax.f32 %v278, %v279
    %v281 = vrot.slane %v280, 2
    %v282 = vmax.f32 %v280, %v281
    %v283 = vrot.slane %v282, 1
    %v284 = vmax.f32 %v282, %v283
    %v285 = vsel %vm126, %v199, -inf
    %v286 = vrot.slane %v285, 4
    %v287 = vmax.f32 %v285, %v286
    %v288 = vrot.slane %v287, 2
    %v289 = vmax.f32 %v287, %v288
    %v290 = vrot.slane %v289, 1
    %v291 = vmax.f32 %v289, %v290
    %v292 = vadd.f32 %v260, %v270
    %v293 = vadd.f32 %v261, %v277
    %v294 = vadd.f32 %v262, %v284
    %v295 = vadd.f32 %v263, %v291
    %v296 = vsel %vm159, %v193, -inf
    %v297 = vrot.slane %v296, 4
    %v298 = vmax.f32 %v296, %v297
    %v299 = vrot.slane %v298, 2
    %v300 = vmax.f32 %v298, %v299
    %v301 = vrot.slane %v300, 1
    %v302 = vmax.f32 %v300, %v301
    %v303 = vsel %vm159, %v195, -inf
    %v304 = vrot.slane %v303, 4
    %v305 = vmax.f32 %v303, %v304
    %v306 = vrot.slane %v305, 2
    %v307 = vmax.f32 %v305, %v306
    %v308 = vrot.slane %v307, 1
    %v309 = vmax.f32 %v307, %v308
    %v310 = vsel %vm159, %v197, -inf
    %v311 = vrot.slane %v310, 4
    %v312 = vmax.f32 %v310, %v311
    %v313 = vrot.slane %v312, 2
    %v314 = vmax.f32 %v312, %v313
    %v315 = vrot.slane %v314, 1
    %v316 = vmax.f32 %v314, %v315
    %v317 = vsel %vm159, %v199, -inf
    %v318 = vrot.slane %v317, 4
    %v319 = vmax.f32 %v317, %v318
    %v320 = vrot.slane %v319, 2
    %v321 = vmax.f32 %v319, %v320
    %v322 = vrot.slane %v321, 1
    %v323 = vmax.f32 %v321, %v322
    %v324 = vadd.f32 %v292, %v302
    %v325 = vadd.f32 %v293, %v309
    %v326 = vadd.f32 %v294, %v316
    %v327 = vadd.f32 %v295, %v323
    %v328 = vmax.f32 %v27, %v28
    %v329 = vmax.f32 %v328, %v29
    %v330 = vmax.f32 %v35, %v36
    %v331 = vmax.f32 %v330, %v37
    %v332 = vmax.f32 %v43, %v44
    %v333 = vmax.f32 %v332, %v45
    %v334 = vmax.f32 %v51, %v52
    %v335 = vmax.f32 %v334, %v53
    %v336 = vsel %vm60, %v329, -inf
    %v337 = vrot.slane %v336, 4
    %v338 = vmax.f32 %v336, %v337
    %v339 = vrot.slane %v338, 2
    %v340 = vmax.f32 %v338, %v339
    %v341 = vrot.slane %v340, 1
    %v342 = vmax.f32 %v340, %v341
    %v343 = vsel %vm60, %v331, -inf
    %v344 = vrot.slane %v343, 4
    %v345 = vmax.f32 %v343, %v344
    %v346 = vrot.slane %v345, 2
    %v347 = vmax.f32 %v345, %v346
    %v348 = vrot.slane %v347, 1
    %v349 = vmax.f32 %v347, %v348
    %v350 = vsel %vm60, %v333, -inf
    %v351 = vrot.slane %v350, 4
    %v352 = vmax.f32 %v350, %v351
    %v353 = vrot.slane %v352, 2
    %v354 = vmax.f32 %v352, %v353
    %v355 = vrot.slane %v354, 1
    %v356 = vmax.f32 %v354, %v355
    %v357 = vsel %vm60, %v335, -inf
    %v358 = vrot.slane %v357, 4
    %v359 = vmax.f32 %v357, %v358
    %v360 = vrot.slane %v359, 2
    %v361 = vmax.f32 %v359, %v360
    %v362 = vrot.slane %v361, 1
    %v363 = vmax.f32 %v361, %v362
    %v364 = vadd.f32 %v324, %v342
    %v365 = vadd.f32 %v325, %v349
    %v366 = vadd.f32 %v326, %v356
    %v367 = vadd.f32 %v327, %v363
    %v368 = vsel %vm93, %v329, -inf
    %v369 = vrot.slane %v368, 4
    %v370 = vmax.f32 %v368, %v369
    %v371 = vrot.slane %v370, 2
    %v372 = vmax.f32 %v370, %v371
    %v373 = vrot.slane %v372, 1
    %v374 = vmax.f32 %v372, %v373
    %v375 = vsel %vm93, %v331, -inf
    %v376 = vrot.slane %v375, 4
    %v377 = vmax.f32 %v375, %v376
    %v378 = vrot.slane %v377, 2
    %v379 = vmax.f32 %v377, %v378
    %v380 = vrot.slane %v379, 1
    %v381 = vmax.f32 %v379, %v380
    %v382 = vsel %vm93, %v333, -inf
    %v383 = vrot.slane %v382, 4
    %v384 = vmax.f32 %v382, %v383
    %v385 = vrot.slane %v384, 2
    %v386 = vmax.f32 %v384, %v385
    %v387 = vrot.slane %v386, 1
    %v388 = vmax.f32 %v386, %v387
    %v389 = vsel %vm93, %v335, -inf
    %v390 = vrot.slane %v389, 4
    %v391 = vmax.f32 %v389, %v390
    %v392 = vrot.slane %v391, 2
    %v393 = vmax.f32 %v391, %v392
    %v394 = vrot.slane %v393, 1
    %v395 = vmax.f32 %v393, %v394
    %v396 = vadd.f32 %v364, %v374
    %v397 = vadd.f32 %v365, %v381
    %v398 = vadd.f32 %v366, %v388
    %v399 = vadd.f32 %v367, %v395
    %v400 = vsel %vm126, %v329, -inf
    %v401 = vrot.slane %v400, 4
    %v402 = vmax.f32 %v400, %v401
    %v403 = vrot.slane %v402, 2
    %v404 = vmax.f32 %v402, %v403
    %v405 = vrot.slane %v404, 1
    %v406 = vmax.f32 %v404, %v405
    %v407 = vsel %vm126, %v331, -inf
    %v408 = vrot.slane %v407, 4
    %v409 = vmax.f32 %v407, %v408
    %v410 = vrot.slane %v409, 2
    %v411 = vmax.f32 %v409, %v410
    %v412 = vrot.slane %v411, 1
    %v413 = vmax.f32 %v411, %v412
    %v414 = vsel %vm126, %v333, -inf
    %v415 = vrot.slane %v414, 4
    %v416 = vmax.f32 %v414, %v415
    %v417 = vrot.slane %v416, 2
    %v418 = vmax.f32 %v416, %v417
    %v419 = vrot.slane %v418, 1
    %v420 = vmax.f32 %v418, %v419
    %v421 = vsel %vm126, %v335, -inf
    %v422 = vrot.slane %v421, 4
    %v423 = vmax.f32 %v421, %v422
    %v424 = vrot.slane %v423, 2
    %v425 = vmax.f32 %v423, %v424
    %v426 = vrot.slane %v425, 1
    %v427 = vmax.f32 %v425, %v426
    %v428 = vadd.f32 %v396, %v406
    %v429 = vadd.f32 %v397, %v413
    %v430 = vadd.f32 %v398, %v420
    %v431 = vadd.f32 %v399, %v427
    %v432 = vsel %vm159, %v329, -inf
    %v433 = vrot.slane %v432, 4
    %v434 = vmax.f32 %v432, %v433
    %v435 = vrot.slane %v434, 2
    %v436 = vmax.f32 %v434, %v435
    %v437 = vrot.slane %v436, 1
    %v438 = vmax.f32 %v436, %v437
    %v439 = vsel %vm159, %v331, -inf
    %v440 = vrot.slane %v439, 4
    %v441 = vmax.f32 %v439, %v440
    %v442 = vrot.slane %v441, 2
    %v443 = vmax.f32 %v441, %v442
    %v444 = vrot.slane %v443, 1
    %v445 = vmax.f32 %v443, %v444
    %v446 = vsel %vm159, %v333, -inf
    %v447 = vrot.slane %v446, 4
    %v448 = vmax.f32 %v446, %v447
    %v449 = vrot.slane %v448, 2
    %v450 = vmax.f32 %v448, %v449
    %v451 = vrot.slane %v450, 1
    %v452 = vmax.f32 %v450, %v451
    %v453 = vsel %vm159, %v335, -inf
    %v454 = vrot.slane %v453, 4
    %v455 = vmax.f32 %v453, %v454
    %v456 = vrot.slane %v455, 2
    %v457 = vmax.f32 %v455, %v456
    %v458 = vrot.slane %v457, 1
    %v459 = vmax.f32 %v457, %v458
    %v460 = vadd.f32 %v428, %v438
    %v461 = vadd.f32 %v429, %v445
    %v462 = vadd.f32 %v430, %v452
    %v463 = vadd.f32 %v431, %v459
    %v464 = vmax.f32 %v29, %v30
    %v465 = vmax.f32 %v464, %v31
    %v466 = vmax.f32 %v37, %v38
    %v467 = vmax.f32 %v466, %v39
    %v468 = vmax.f32 %v45, %v46
    %v469 = vmax.f32 %v468, %v47
    %v470 = vmax.f32 %v53, %v54
    %v471 = vmax.f32 %v470, %v55
    %v472 = vsel %vm60, %v465, -inf
    %v473 = vrot.slane %v472, 4
    %v474 = vmax.f32 %v472, %v473
    %v475 = vrot.slane %v474, 2
    %v476 = vmax.f32 %v474, %v475
    %v477 = vrot.slane %v476, 1
    %v478 = vmax.f32 %v476, %v477
    %v479 = vsel %vm60, %v467, -inf
    %v480 = vrot.slane %v479, 4
    %v481 = vmax.f32 %v479, %v480
    %v482 = vrot.slane %v481, 2
    %v483 = vmax.f32 %v481, %v482
    %v484 = vrot.slane %v483, 1
    %v485 = vmax.f32 %v483, %v484
    %v486 = vsel %vm60, %v469, -inf
    %v487 = vrot.slane %v486, 4
    %v488 = vmax.f32 %v486, %v487
    %v489 = vrot.slane %v488, 2
    %v490 = vmax.f32 %v488, %v489
    %v491 = vrot.slane %v490, 1
    %v492 = vmax.f32 %v490, %v491
    %v493 = vsel %vm60, %v471, -inf
    %v494 = vrot.slane %v493, 4
    %v495 = vmax.f32 %v493, %v494
    %v496 = vrot.slane %v495, 2
    %v497 = vmax.f32 %v495, %v496
    %v498 = vrot.slane %v497, 1
    %v499 = vmax.f32 %v497, %v498
    %v500 = vadd.f32 %v460, %v478
    %v501 = vadd.f32 %v461, %v485
    %v502 = vadd.f32 %v462, %v492
    %v503 = vadd.f32 %v463, %v499
    %v504 = vsel %vm93, %v465, -inf
    %v505 = vrot.slane %v504, 4
    %v506 = vmax.f32 %v504, %v505
    %v507 = vrot.slane %v506, 2
    %v508 = vmax.f32 %v506, %v507
    %v509 = vrot.slane %v508, 1
    %v510 = vmax.f32 %v508, %v509
    %v511 = vsel %vm93, %v467, -inf
    %v512 = vrot.slane %v511, 4
    %v513 = vmax.f32 %v511, %v512
    %v514 = vrot.slane %v513, 2
    %v515 = vmax.f32 %v513, %v514
    %v516 = vrot.slane %v515, 1
    %v517 = vmax.f32 %v515, %v516
    %v518 = vsel %vm93, %v469, -inf
    %v519 = vrot.slane %v518, 4
    %v520 = vmax.f32 %v518, %v519
    %v521 = vrot.slane %v520, 2
    %v522 = vmax.f32 %v520, %v521
    %v523 = vrot.slane %v522, 1
    %v524 = vmax.f32 %v522, %v523
    %v525 = vsel %vm93, %v471, -inf
    %v526 = vrot.slane %v525, 4
    %v527 = vmax.f32 %v525, %v526
    %v528 = vrot.slane %v527, 2
    %v529 = vmax.f32 %v527, %v528
    %v530 = vrot.slane %v529, 1
    %v531 = vmax.f32 %v529, %v530
    %v532 = vadd.f32 %v500, %v510
    %v533 = vadd.f32 %v501, %v517
    %v534 = vadd.f32 %v502, %v524
    %v535 = vadd.f32 %v503, %v531
    %v536 = vsel %vm126, %v465, -inf
    %v537 = vrot.slane %v536, 4
    %v538 = vmax.f32 %v536, %v537
    %v539 = vrot.slane %v538, 2
    %v540 = vmax.f32 %v538, %v539
    %v541 = vrot.slane %v540, 1
    %v542 = vmax.f32 %v540, %v541
    %v543 = vsel %vm126, %v467, -inf
    %v544 = vrot.slane %v543, 4
    %v545 = vmax.f32 %v543, %v544
    %v546 = vrot.slane %v545, 2
    %v547 = vmax.f32 %v545, %v546
    %v548 = vrot.slane %v547, 1
    %v549 = vmax.f32 %v547, %v548
    %v550 = vsel %vm126, %v469, -inf
    %v551 = vrot.slane %v550, 4
    %v552 = vmax.f32 %v550, %v551
    %v553 = vrot.slane %v552, 2
    %v554 = vmax.f32 %v552, %v553
    %v555 = vrot.slane %v554, 1
    %v556 = vmax.f32 %v554, %v555
    %v557 = vsel %vm126, %v471, -inf
    %v558 = vrot.slane %v557, 4
    %v559 = vmax.f32 %v557, %v558
    %v560 = vrot.slane %v559, 2
    %v561 = vmax.f32 %v559, %v560
    %v562 = vrot.slane %v561, 1
    %v563 = vmax.f32 %v561, %v562
    %v564 = vadd.f32 %v532, %v542
    %v565 = vadd.f32 %v533, %v549
    %v566 = vadd.f32 %v534, %v556
    %v567 = vadd.f32 %v535, %v563
    %v568 = vsel %vm159, %v465, -inf
    %v569 = vrot.slane %v568, 4
    %v570 = vmax.f32 %v568, %v569
    %v571 = vrot.slane %v570, 2
    %v572 = vmax.f32 %v570, %v571
    %v573 = vrot.slane %v572, 1
    %v574 = vmax.f32 %v572, %v573
    %v575 = vsel %vm159, %v467, -inf
    %v576 = vrot.slane %v575, 4
    %v577 = vmax.f32 %v575, %v576
    %v578 = vrot.slane %v577, 2
    %v579 = vmax.f32 %v577, %v578
    %v580 = vrot.slane %v579, 1
    %v581 = vmax.f32 %v579, %v580
    %v582 = vsel %vm159, %v469, -inf
    %v583 = vrot.slane %v582, 4
    %v584 = vmax.f32 %v582, %v583
    %v585 = vrot.slane %v584, 2
    %v586 = vmax.f32 %v584, %v585
    %v587 = vrot.slane %v586, 1
    %v588 = vmax.f32 %v586, %v587
    %v589 = vsel %vm159, %v471, -inf
    %v590 = vrot.slane %v589, 4
    %v591 = vmax.f32 %v589, %v590
    %v592 = vrot.slane %v591, 2
    %v593 = vmax.f32 %v591, %v592
    %v594 = vrot.slane %v593, 1
    %v595 = vmax.f32 %v593, %v594
    %v596 = vadd.f32 %v564, %v574
    %v597 = vadd.f32 %v565, %v581
    %v598 = vadd.f32 %v566, %v588
    %v599 = vadd.f32 %v567, %v595
    %v600 = vmul.f32 %v596, 0.0625
    %v601 = vmul.f32 %v597, 0.0625
    %v602 = vmul.f32 %v598, 0.0625
    %v603 = vmul.f32 %v599, 0.0625
    %v604 = vld [vmem:[%s3] sm:$0x1]
    %v605 = vld [vmem:[%s1] sm:$0xff]
    %v606 = vld [vmem:[%s1 + $0x8] sm:$0xff]
    %v607 = vld [vmem:[%s1 + $0x10] sm:$0xff]
    %v608 = vld [vmem:[%s1 + $0x18] sm:$0xff]
    %v609 = vld [vmem:[%s1 + $0x20] sm:$0xff]
    %v610 = vld [vmem:[%s1 + $0x28] sm:$0xff]
    %v611 = vld [vmem:[%s1 + $0x30] sm:$0xff]
    %v612 = vld [vmem:[%s1 + $0x38] sm:$0xff]
    %v613 = vld [vmem:[%s1 + $0x40] sm:$0xff]
    %v614 = vld [vmem:[%s1 + $0x48] sm:$0xff]
    %v615 = vld [vmem:[%s1 + $0x50] sm:$0xff]
    %v616 = vld [vmem:[%s1 + $0x58] sm:$0xff]
    %v617 = vld [vmem:[%s1 + $0x60] sm:$0xff]
    %v618 = vld [vmem:[%s1 + $0x68] sm:$0xff]
    %v619 = vld [vmem:[%s1 + $0x70] sm:$0xff]
    %v620 = vld [vmem:[%s1 + $0x78] sm:$0xff]
    %v622 = vlaneseq
    %v623 = vshrl.u32 %v622, 7
    %v624 = vsub.s32 0, %v623
    %v625 = vrot.slane %v604, %v624
    %vm629 = vcmask 1041409
    %v630 = vsel %vm629, %v601, %v600
    %632 = vmatprep.subr.mxu0 0.0
    %633 = vmatpush1.msra.mxu0 %v620
    %634 = vmatprep.subr.mxu0 0.0
    %635 = vmatpush1.msra.mxu0 %v619
    %636 = vmatprep.subr.mxu0 0.0
    %637 = vmatpush1.msra.mxu0 %v618
    %638 = vmatprep.subr.mxu0 0.0
    %639 = vmatpush1.msra.mxu0 %v617
    %640 = vmatprep.subr.mxu0 0.0
    %641 = vmatpush1.msra.mxu0 %v616
    %642 = vmatprep.subr.mxu0 0.0
    %643 = vmatpush1.msra.mxu0 %v615
    %644 = vmatprep.subr.mxu0 0.0
    %645 = vmatpush1.msra.mxu0 %v614
    %646 = vmatprep.subr.mxu0 0.0
    %647 = vmatpush1.msra.mxu0 %v613
    %648 = vmatprep.subr.mxu0 0.0
    %649 = vmatpush1.msra.mxu0 %v612
    %650 = vmatprep.subr.mxu0 0.0
    %651 = vmatpush1.msra.mxu0 %v611
    %652 = vmatprep.subr.mxu0 0.0
    %653 = vmatpush1.msra.mxu0 %v610
    %654 = vmatprep.subr.mxu0 0.0
    %655 = vmatpush1.msra.mxu0 %v609
    %656 = vmatprep.subr.mxu0 0.0
    %657 = vmatpush1.msra.mxu0 %v608
    %658 = vmatprep.subr.mxu0 0.0
    %659 = vmatpush1.msra.mxu0 %v607
    %660 = vmatprep.subr.mxu0 0.0
    %661 = vmatpush1.msra.mxu0 %v606
    %662 = vmatprep.subr.mxu0 0.0
    %663 = vmatpush1.msra.mxu0 %v605
    %664 = vmatprep.subr.mxu0 0.0
    %665 = vmatpush2.msra.mxu0 0.0
    %666 = vmatprep.subr.mxu0 0.0
    %667 = vmatpush2.msra.mxu0 0.0
    %668 = vmatprep.subr.mxu0 0.0
    %669 = vmatpush2.msra.mxu0 0.0
    %670 = vmatprep.subr.mxu0 0.0
    %671 = vmatpush2.msra.mxu0 0.0
    %672 = vmatprep.subr.mxu0 0.0
    %673 = vmatpush2.msra.mxu0 0.0
    %674 = vmatprep.subr.mxu0 0.0
    %675 = vmatpush2.msra.mxu0 0.0
    %676 = vmatprep.subr.mxu0 0.0
    %677 = vmatpush2.msra.mxu0 0.0
    %678 = vmatprep.subr.mxu0 0.0
    %679 = vmatpush2.msra.mxu0 0.0
    %680 = vmatprep.subr.mxu0 0.0
    %681 = vmatpush2.msra.mxu0 0.0
    %682 = vmatprep.subr.mxu0 0.0
    %683 = vmatpush2.msra.mxu0 0.0
    %684 = vmatprep.subr.mxu0 0.0
    %685 = vmatpush2.msra.mxu0 0.0
    %686 = vmatprep.subr.mxu0 0.0
    %687 = vmatpush2.msra.mxu0 0.0
    %688 = vmatprep.subr.mxu0 0.0
    %689 = vmatpush2.msra.mxu0 0.0
    %690 = vmatprep.subr.mxu0 0.0
    %691 = vmatpush2.msra.mxu0 0.0
    %692 = vmatprep.subr.mxu0 0.0
    %693 = vmatpush2.msra.mxu0 0.0
    %694 = vmatprep.subr.mxu0 0.0
    %695 = vmatpush2.msra.mxu0 0.0
    %696 = vmatprep.mubr.f32.mxu0 0.0
    %697 = vmatmul.mubr.f32.gmra.mxu0 %v630
    %v698 = vpop.f32.mrf.mxu0
    %v699 = vadd.f32 %v625, %v698
    %v700 = vpop.f32.mrf.mxu0
    %701 = vdwg.mxu0
    %v702 = vtanh.pop %v699
    %v703 = vld [vmem:[%s2] sm:$0xff]
    %v704 = vld [vmem:[%s2 + $0x8] sm:$0xff]
    %v705 = vld [vmem:[%s2 + $0x10] sm:$0xff]
    %v706 = vld [vmem:[%s2 + $0x18] sm:$0xff]
    %v707 = vld [vmem:[%s2 + $0x20] sm:$0xff]
    %v708 = vld [vmem:[%s2 + $0x28] sm:$0xff]
    %v709 = vld [vmem:[%s2 + $0x30] sm:$0xff]
    %v710 = vld [vmem:[%s2 + $0x38] sm:$0xff]
    %v711 = vld [vmem:[%s2 + $0x40] sm:$0xff]
    %v712 = vld [vmem:[%s2 + $0x48] sm:$0xff]
    %v713 = vld [vmem:[%s2 + $0x50] sm:$0xff]
    %v714 = vld [vmem:[%s2 + $0x58] sm:$0xff]
    %v715 = vld [vmem:[%s2 + $0x60] sm:$0xff]
    %v716 = vld [vmem:[%s2 + $0x68] sm:$0xff]
    %v717 = vld [vmem:[%s2 + $0x70] sm:$0xff]
    %v718 = vld [vmem:[%s2 + $0x78] sm:$0xff]
    %719 = vmatprep.subr.mxu0 0.0
    %720 = vmatpush1.msra.mxu0 %v718
    %721 = vmatprep.subr.mxu0 0.0
    %722 = vmatpush1.msra.mxu0 %v717
    %723 = vmatprep.subr.mxu0 0.0
    %724 = vmatpush1.msra.mxu0 %v716
    %725 = vmatprep.subr.mxu0 0.0
    %726 = vmatpush1.msra.mxu0 %v715
    %727 = vmatprep.subr.mxu0 0.0
    %728 = vmatpush1.msra.mxu0 %v714
    %729 = vmatprep.subr.mxu0 0.0
    %730 = vmatpush1.msra.mxu0 %v713
    %731 = vmatprep.subr.mxu0 0.0
    %732 = vmatpush1.msra.mxu0 %v712
    %733 = vmatprep.subr.mxu0 0.0
    %734 = vmatpush1.msra.mxu0 %v711
    %735 = vmatprep.subr.mxu0 0.0
    %736 = vmatpush1.msra.mxu0 %v710
    %737 = vmatprep.subr.mxu0 0.0
    %738 = vmatpush1.msra.mxu0 %v709
    %739 = vmatprep.subr.mxu0 0.0
    %740 = vmatpush1.msra.mxu0 %v708
    %741 = vmatprep.subr.mxu0 0.0
    %742 = vmatpush1.msra.mxu0 %v707
    %743 = vmatprep.subr.mxu0 0.0
    %744 = vmatpush1.msra.mxu0 %v706
    %745 = vmatprep.subr.mxu0 0.0
    %746 = vmatpush1.msra.mxu0 %v705
    %747 = vmatprep.subr.mxu0 0.0
    %748 = vmatpush1.msra.mxu0 %v704
    %749 = vmatprep.subr.mxu0 0.0
    %750 = vmatpush1.msra.mxu0 %v703
    %751 = vmatprep.subr.mxu0 0.0
    %752 = vmatpush2.msra.mxu0 0.0
    %753 = vmatprep.subr.mxu0 0.0
    %754 = vmatpush2.msra.mxu0 0.0
    %755 = vmatprep.subr.mxu0 0.0
    %756 = vmatpush2.msra.mxu0 0.0
    %757 = vmatprep.subr.mxu0 0.0
    %758 = vmatpush2.msra.mxu0 0.0
    %759 = vmatprep.subr.mxu0 0.0
    %760 = vmatpush2.msra.mxu0 0.0
    %761 = vmatprep.subr.mxu0 0.0
    %762 = vmatpush2.msra.mxu0 0.0
    %763 = vmatprep.subr.mxu0 0.0
    %764 = vmatpush2.msra.mxu0 0.0
    %765 = vmatprep.subr.mxu0 0.0
    %766 = vmatpush2.msra.mxu0 0.0
    %767 = vmatprep.subr.mxu0 0.0
    %768 = vmatpush2.msra.mxu0 0.0
    %769 = vmatprep.subr.mxu0 0.0
    %770 = vmatpush2.msra.mxu0 0.0
    %771 = vmatprep.subr.mxu0 0.0
    %772 = vmatpush2.msra.mxu0 0.0
    %773 = vmatprep.subr.mxu0 0.0
    %774 = vmatpush2.msra.mxu0 0.0
    %775 = vmatprep.subr.mxu0 0.0
    %776 = vmatpush2.msra.mxu0 0.0
    %777 = vmatprep.subr.mxu0 0.0
    %778 = vmatpush2.msra.mxu0 0.0
    %779 = vmatprep.subr.mxu0 0.0
    %780 = vmatpush2.msra.mxu0 0.0
    %781 = vmatprep.subr.mxu0 0.0
    %782 = vmatpush2.msra.mxu0 0.0
    %783 = vmatprep.mubr.f32.mxu0 0.0
    %784 = vmatmul.mubr.f32.gmra.mxu0 %v702
    %v785 = vpop.f32.mrf.mxu0
    %v786 = vadd.f32 0.0, %v785
    %v787 = vpop.f32.mrf.mxu0
    %788 = vdwg.mxu0
    %v791 = vsel %vm629, %v603, %v602
    %793 = vmatprep.subr.mxu0 0.0
    %794 = vmatpush1.msra.mxu0 %v620
    %795 = vmatprep.subr.mxu0 0.0
    %796 = vmatpush1.msra.mxu0 %v619
    %797 = vmatprep.subr.mxu0 0.0
    %798 = vmatpush1.msra.mxu0 %v618
    %799 = vmatprep.subr.mxu0 0.0
    %800 = vmatpush1.msra.mxu0 %v617
    %801 = vmatprep.subr.mxu0 0.0
    %802 = vmatpush1.msra.mxu0 %v616
    %803 = vmatprep.subr.mxu0 0.0
    %804 = vmatpush1.msra.mxu0 %v615
    %805 = vmatprep.subr.mxu0 0.0
    %806 = vmatpush1.msra.mxu0 %v614
    %807 = vmatprep.subr.mxu0 0.0
    %808 = vmatpush1.msra.mxu0 %v613
    %809 = vmatprep.subr.mxu0 0.0
    %810 = vmatpush1.msra.mxu0 %v612
    %811 = vmatprep.subr.mxu0 0.0
    %812 = vmatpush1.msra.mxu0 %v611
    %813 = vmatprep.subr.mxu0 0.0
    %814 = vmatpush1.msra.mxu0 %v610
    %815 = vmatprep.subr.mxu0 0.0
    %816 = vmatpush1.msra.mxu0 %v609
    %817 = vmatprep.subr.mxu0 0.0
    %818 = vmatpush1.msra.mxu0 %v608
    %819 = vmatprep.subr.mxu0 0.0
    %820 = vmatpush1.msra.mxu0 %v607
    %821 = vmatprep.subr.mxu0 0.0
    %822 = vmatpush1.msra.mxu0 %v606
    %823 = vmatprep.subr.mxu0 0.0
    %824 = vmatpush1.msra.mxu0 %v605
    %825 = vmatprep.subr.mxu0 0.0
    %826 = vmatpush2.msra.mxu0 0.0
    %827 = vmatprep.subr.mxu0 0.0
    %828 = vmatpush2.msra.mxu0 0.0
    %829 = vmatprep.subr.mxu0 0.0
    %830 = vmatpush2.msra.mxu0 0.0
    %831 = vmatprep.subr.mxu0 0.0
    %832 = vmatpush2.msra.mxu0 0.0
    %833 = vmatprep.subr.mxu0 0.0
    %834 = vmatpush2.msra.mxu0 0.0
    %835 = vmatprep.subr.mxu0 0.0
    %836 = vmatpush2.msra.mxu0 0.0
    %837 = vmatprep.subr.mxu0 0.0
    %838 = vmatpush2.msra.mxu0 0.0
    %839 = vmatprep.subr.mxu0 0.0
    %840 = vmatpush2.msra.mxu0 0.0
    %841 = vmatprep.subr.mxu0 0.0
    %842 = vmatpush2.msra.mxu0 0.0
    %843 = vmatprep.subr.mxu0 0.0
    %844 = vmatpush2.msra.mxu0 0.0
    %845 = vmatprep.subr.mxu0 0.0
    %846 = vmatpush2.msra.mxu0 0.0
    %847 = vmatprep.subr.mxu0 0.0
    %848 = vmatpush2.msra.mxu0 0.0
    %849 = vmatprep.subr.mxu0 0.0
    %850 = vmatpush2.msra.mxu0 0.0
    %851 = vmatprep.subr.mxu0 0.0
    %852 = vmatpush2.msra.mxu0 0.0
    %853 = vmatprep.subr.mxu0 0.0
    %854 = vmatpush2.msra.mxu0 0.0
    %855 = vmatprep.subr.mxu0 0.0
    %856 = vmatpush2.msra.mxu0 0.0
    %857 = vmatprep.mubr.f32.mxu0 0.0
    %858 = vmatmul.mubr.f32.gmra.mxu0 %v791
    %v859 = vpop.f32.mrf.mxu0
    %v860 = vadd.f32 %v786, %v859
    %v861 = vpop.f32.mrf.mxu0
    %862 = vdwg.mxu0
    %v863 = vadd.f32 %v860, %v625
    %v864 = vtanh.pop %v863
    %v865 = vld [vmem:[%s4] sm:$0xff]
    %v866 = vld [vmem:[%s4 + $0x8] sm:$0xff]
    %v867 = vld [vmem:[%s4 + $0x10] sm:$0xff]
    %v868 = vld [vmem:[%s4 + $0x18] sm:$0xff]
    %v869 = vld [vmem:[%s4 + $0x20] sm:$0xff]
    %v870 = vld [vmem:[%s4 + $0x28] sm:$0xff]
    %v871 = vld [vmem:[%s4 + $0x30] sm:$0xff]
    %v872 = vld [vmem:[%s4 + $0x38] sm:$0xff]
    %v873 = vld [vmem:[%s4 + $0x40] sm:$0xff]
    %v874 = vld [vmem:[%s4 + $0x48] sm:$0xff]
    %v875 = vld [vmem:[%s4 + $0x50] sm:$0xff]
    %v876 = vld [vmem:[%s4 + $0x58] sm:$0xff]
    %v877 = vld [vmem:[%s4 + $0x60] sm:$0xff]
    %v878 = vld [vmem:[%s4 + $0x68] sm:$0xff]
    %v879 = vld [vmem:[%s4 + $0x70] sm:$0xff]
    %v880 = vld [vmem:[%s4 + $0x78] sm:$0xff]
    %v881 = vld [vmem:[%s5] sm:$0x1]
    %v883 = vlaneseq
    %v884 = vshrl.u32 %v883, 7
    %v885 = vsub.s32 0, %v884
    %v886 = vrot.slane %v881, %v885
    %888 = vmatprep.subr.mxu0 0.0
    %889 = vmatpush1.msra.mxu0 %v880
    %890 = vmatprep.subr.mxu0 0.0
    %891 = vmatpush1.msra.mxu0 %v879
    %892 = vmatprep.subr.mxu0 0.0
    %893 = vmatpush1.msra.mxu0 %v878
    %894 = vmatprep.subr.mxu0 0.0
    %895 = vmatpush1.msra.mxu0 %v877
    %896 = vmatprep.subr.mxu0 0.0
    %897 = vmatpush1.msra.mxu0 %v876
    %898 = vmatprep.subr.mxu0 0.0
    %899 = vmatpush1.msra.mxu0 %v875
    %900 = vmatprep.subr.mxu0 0.0
    %901 = vmatpush1.msra.mxu0 %v874
    %902 = vmatprep.subr.mxu0 0.0
    %903 = vmatpush1.msra.mxu0 %v873
    %904 = vmatprep.subr.mxu0 0.0
    %905 = vmatpush1.msra.mxu0 %v872
    %906 = vmatprep.subr.mxu0 0.0
    %907 = vmatpush1.msra.mxu0 %v871
    %908 = vmatprep.subr.mxu0 0.0
    %909 = vmatpush1.msra.mxu0 %v870
    %910 = vmatprep.subr.mxu0 0.0
    %911 = vmatpush1.msra.mxu0 %v869
    %912 = vmatprep.subr.mxu0 0.0
    %913 = vmatpush1.msra.mxu0 %v868
    %914 = vmatprep.subr.mxu0 0.0
    %915 = vmatpush1.msra.mxu0 %v867
    %916 = vmatprep.subr.mxu0 0.0
    %917 = vmatpush1.msra.mxu0 %v866
    %918 = vmatprep.subr.mxu0 0.0
    %919 = vmatpush1.msra.mxu0 %v865
    %920 = vmatprep.subr.mxu0 0.0
    %921 = vmatpush2.msra.mxu0 0.0
    %922 = vmatprep.subr.mxu0 0.0
    %923 = vmatpush2.msra.mxu0 0.0
    %924 = vmatprep.subr.mxu0 0.0
    %925 = vmatpush2.msra.mxu0 0.0
    %926 = vmatprep.subr.mxu0 0.0
    %927 = vmatpush2.msra.mxu0 0.0
    %928 = vmatprep.subr.mxu0 0.0
    %929 = vmatpush2.msra.mxu0 0.0
    %930 = vmatprep.subr.mxu0 0.0
    %931 = vmatpush2.msra.mxu0 0.0
    %932 = vmatprep.subr.mxu0 0.0
    %933 = vmatpush2.msra.mxu0 0.0
    %934 = vmatprep.subr.mxu0 0.0
    %935 = vmatpush2.msra.mxu0 0.0
    %936 = vmatprep.subr.mxu0 0.0
    %937 = vmatpush2.msra.mxu0 0.0
    %938 = vmatprep.subr.mxu0 0.0
    %939 = vmatpush2.msra.mxu0 0.0
    %940 = vmatprep.subr.mxu0 0.0
    %941 = vmatpush2.msra.mxu0 0.0
    %942 = vmatprep.subr.mxu0 0.0
    %943 = vmatpush2.msra.mxu0 0.0
    %944 = vmatprep.subr.mxu0 0.0
    %945 = vmatpush2.msra.mxu0 0.0
    %946 = vmatprep.subr.mxu0 0.0
    %947 = vmatpush2.msra.mxu0 0.0
    %948 = vmatprep.subr.mxu0 0.0
    %949 = vmatpush2.msra.mxu0 0.0
    %950 = vmatprep.subr.mxu0 0.0
    %951 = vmatpush2.msra.mxu0 0.0
    %952 = vmatprep.mubr.f32.mxu0 0.0
    %953 = vmatmul.mubr.f32.gmra.mxu0 %v864
    %v954 = vpop.f32.mrf.mxu0
    %v955 = vadd.f32 %v886, %v954
    %v956 = vpop.f32.mrf.mxu0
    %957 = vdwg.mxu0
    %v958 = vxor.u32 %v955, 2147483648
    %v959 = vmul.f32 %v958, 1.442695
    %v960 = vpow.pop %v959
    %v961 = vadd.f32 %v960, 1.0
    %v962 = vrcp.pop %v961
    %v963 = vmul.f32 1.0, %v962
    %vm964 = vcmask 58368
    %965 = vst.msk [vmem:[#allocation2] sm:$0x3] %vm964, %v963
    // Predicated region
    $region26: #{_lambda_.3} parent=1 // pred_check
      _
    $region27: #{_lambda_.3} parent=1 // pred_check_branch
      %967 = sbr.rel (0) target = $region29
    $region28: #{_lambda_.3} parent=1 // pred_region
      %s969 = ssub.s32 32, 32
      %970 = vsyncadd [#allocation3], %s969
      %s972 = sshll.u32 [#allocation2], 4
      %s973 = int_to_ptr.vmem [resolvable:$true] %s972
      %975 = dma.vmem_to_hbm [thread:$0]  %s973, 32, %s6, [#allocation3]
    $region29: #{_lambda_.3} parent=1 // pred_fallthru
      _
    // Predicated region
    $region30: #{_lambda_.3} parent=1 // pred_check
      _
    $region31: #{_lambda_.3} parent=1 // pred_check_branch
      %977 = sbr.rel (0) target = $region33
    $region32: #{_lambda_.3} parent=1 // pred_region
      %978 = dma.done [#allocation3], 32
    $region33: #{_lambda_.3} parent=1 // pred_fallthru
      _
    %979 = vsyncpa [#allocation3], 1

</llo_original>
